<compile_context>
chip_gen: v7x
topology: tpu7x:2x2x1
jax: 0.10.0
libtpu: 0.0.40
codegen_flags: <defaults>
</compile_context>

<pallas_src>
import jax
import jax.numpy as jnp
from jax.experimental import pallas as pl
from jax.experimental.pallas import tpu as pltpu

# ------------------------- configuration (small shapes) ----------------------
N_NODES = 8     # number of graph nodes (acts as the "batch" for the LSTM)
T_STEPS = 4     # adj.shape[1]; forward uses time steps 1..T-1  -> T-1 = 3
NFEAT   = 16
NHID    = 8
NCLASS  = 8     # must equal NHID for the original PyTorch module to be valid


# ------------------------------ fused Pallas kernel ---------------------------
def fused_gnn_kernel(
        x_ref, an_ref, am_ref,                          # stacked feats / block-diag graph
        w1_ref, b1_ref, w2_ref, b2_ref,                 # SAGE 1 / 2 (fused self|neigh)
        wg_ref, al_ref, ar_ref, bg_ref,                 # GAT (1 head)
        l0_wih_ref, l0_whf_ref, l0_whb_ref, l0_b_ref,   # BiLSTM layer 0
        l1_wif_ref, l1_wib_ref, l1_whf_ref, l1_b_ref,   # BiLSTM layer 1
        w22_ref, b22_ref,                               # linear22
        out_ref,                                        # [N, C] log_softmax
        l0f_ref, l0b_ref):                              # VMEM scratch: layer-0 outputs
    n, c = out_ref.shape           # nodes, nclass (== nhid)
    tn = x_ref.shape[0]            # t1 * n (time steps stacked on sublanes)
    t1 = tn // n
    f32 = jnp.float32

    x = x_ref[...]                 # [TN, F]
    an = an_ref[...]               # [TN, TN] block-diag row-normalized adjacency
    am = am_ref[...]               # [TN, TN] block-diag 0/1 mask (incl. self loops)

    # ---- SAGEConv 1 (mean aggregation) + ReLU; self|neigh projection fused ----
    neigh1 = jnp.dot(an, x, preferred_element_type=f32)
    h1 = jnp.dot(jnp.concatenate([x, neigh1], axis=-1), w1_ref[...],
                 preferred_element_type=f32) + b1_ref[...]
    h1 = jnp.maximum(h1, 0.0)
    # F.dropout(training=False) -> identity

    # ---- SAGEConv 2 (mean aggregation) ----
    neigh2 = jnp.dot(an, h1, preferred_element_type=f32)
    h2 = jnp.dot(jnp.concatenate([h1, neigh2], axis=-1), w2_ref[...],
                 preferred_element_type=f32) + b2_ref[...]

    # ---- GATConv, 1 head: masked softmax over the block-diagonal graph ----
    z = jnp.dot(h2, wg_ref[...], preferred_element_type=f32)             # [TN, C]
    el = jnp.sum(z * al_ref[...], axis=-1, keepdims=True)                # [TN, 1]
    er = jnp.sum(z * ar_ref[...], axis=-1, keepdims=True)                # [TN, 1]
    # e[i, j] = leaky_relu(er_i + el_j)   (dst i, src j)
    e = er + jnp.transpose(jnp.broadcast_to(el, (tn, tn)))
    e = jnp.where(e > 0, e, 0.2 * e)                                      # LeakyReLU(0.2)
    e = jnp.where(am > 0, e, -1e30)                                       # mask non-edges
    e = e - jnp.max(e, axis=1, keepdims=True)
    p = jnp.exp(e)
    alpha = p * pl.reciprocal(jnp.sum(p, axis=1, keepdims=True), approx=True)
    seq = jnp.dot(alpha, z, preferred_element_type=f32) + bg_ref[...]     # [TN, C]

    # ---- BiLSTM (2 layers, batch = nodes, seq = time), gate order (i, f, g, o) ----
    def lstm_cell(gates, c_prev):
        i_g = jax.nn.sigmoid(gates[:, 0:c])
        f_g = jax.nn.sigmoid(gates[:, c:2 * c])
        g_g = jnp.tanh(gates[:, 2 * c:3 * c])
        o_g = jax.nn.sigmoid(gates[:, 3 * c:4 * c])
        c_new = f_g * c_prev + i_g * g_g
        return o_g * jnp.tanh(c_new), c_new

    zeros = jnp.zeros((n, c), f32)

    # Layer 0: one 64-lane matmul covers the input->gates projection for BOTH
    # directions at ALL time steps (fwd gates = lanes 0:4C, bwd = 4C:8C).
    g0 = jnp.dot(seq, l0_wih_ref[...], preferred_element_type=f32) + l0_b_ref[...]  # [TN, 8C]
    w0hf = l0_whf_ref[...]
    w0hb = l0_whb_ref[...]

    hf, cf = zeros, zeros
    for k in range(t1):                                  # forward direction (unrolled)
        gates = (g0[k * n:(k + 1) * n, 0:4 * c]
                 + jnp.dot(hf, w0hf, preferred_element_type=f32))
        hf, cf = lstm_cell(gates, cf)
        l0f_ref[pl.ds(k * n, n), :] = hf
    hb, cb = zeros, zeros
    for k in range(t1):                                  # backward direction (unrolled)
        t = t1 - 1 - k
        gates = (g0[t * n:(t + 1) * n, 4 * c:8 * c]
                 + jnp.dot(hb, w0hb, preferred_element_type=f32))
        hb, cb = lstm_cell(gates, cb)
        l0b_ref[pl.ds(t * n, n), :] = hb

    # Layer 1 input->gates, again batched over all steps and both directions;
    # the layer-0 fwd/bwd halves are consumed straight from scratch (no concat).
    g1 = (jnp.dot(l0f_ref[...], l1_wif_ref[...], preferred_element_type=f32)
          + jnp.dot(l0b_ref[...], l1_wib_ref[...], preferred_element_type=f32)
          + l1_b_ref[...])                                               # [TN, 8C]
    w1hf = l1_whf_ref[...]

    hf1, cf1 = zeros, zeros
    for k in range(t1):                                  # layer-1 forward: final state
        gates = (g1[k * n:(k + 1) * n, 0:4 * c]
                 + jnp.dot(hf1, w1hf, preferred_element_type=f32))
        hf1, cf1 = lstm_cell(gates, cf1)
    # Layer-1 backward: its output at the LAST time index is its FIRST step,
    # computed from h0 = c0 = 0, so the recurrent term vanishes.
    hb1, _ = lstm_cell(g1[(t1 - 1) * n:tn, 4 * c:8 * c], zeros)

    # ---- linear22 + log_softmax (head fused; w22 split over the two halves) ----
    w22 = w22_ref[...]
    logits = (jnp.dot(hf1, w22[0:c, :], preferred_element_type=f32)
              + jnp.dot(hb1, w22[c:2 * c, :], preferred_element_type=f32)
              + b22_ref[...])
    m = jnp.max(logits, axis=1, keepdims=True)
    s = logits - m
    lse = jnp.log(jnp.sum(jnp.exp(s), axis=1, keepdims=True))
    out_ref[...] = s - lse


# ------------------------------ wrapper ---------------------------------------
def mygnn_forward(x, adj, params):
    n, t, f = x.shape
    t1 = t - 1
    nhid = params["b1"].shape[1]
    nclass = params["b22"].shape[1]
    assert nhid == nclass, "original module only type-checks when nhid == nclass"

    # ---- glue: dense per-step graphs, stacked block-diagonally over time ----
    xs = jnp.transpose(x, (1, 0, 2))[1:]                               # [T1, N, F]
    a = jnp.transpose(adj, (1, 0, 2))[1:]                              # [T1, N, N]
    a = jnp.maximum((a != 0).astype(jnp.float32),
                    (jnp.swapaxes(a, 1, 2) != 0).astype(jnp.float32))  # undirected
    a = a + jnp.eye(n, dtype=jnp.float32)[None]                        # add self loops
    a_norm = a / jnp.sum(a, axis=-1, keepdims=True)                    # mean aggregation
    a_mask = (a > 0).astype(jnp.float32)

    eye_t = jnp.eye(t1, dtype=jnp.float32)

    def block_diag(blocks):        # [T1, N, N] -> [T1*N, T1*N], zero off-block
        return (eye_t[:, None, :, None] * blocks[:, :, None, :]).reshape(t1 * n, t1 * n)

    a_norm_bd = block_diag(a_norm)
    a_mask_bd = block_diag(a_mask)
    x_st = xs.reshape(t1 * n, f)   # time steps stacked on the sublane axis

    # NOTE: params["l1_whh_b"] is not passed: the layer-1 backward direction only
    # contributes its FIRST step (with h0 = 0) to out[:, -1, :], so its recurrent
    # weight cannot affect this forward output.
    out = pl.pallas_call(
        fused_gnn_kernel,
        out_shape=jax.ShapeDtypeStruct((n, nclass), jnp.float32),
        scratch_shapes=[pltpu.VMEM((t1 * n, nclass), jnp.float32),   # layer-0 fwd outputs
                        pltpu.VMEM((t1 * n, nclass), jnp.float32)],  # layer-0 bwd outputs
    )(x_st, a_norm_bd, a_mask_bd,
      params["w1"], params["b1"], params["w2"], params["b2"],
      params["wg"], params["attn_l"], params["attn_r"], params["bg"],
      params["l0_wih"], params["l0_whh_f"], params["l0_whh_b"], params["l0_b"],
      params["l1_wih_fin"], params["l1_wih_bin"], params["l1_whh_f"], params["l1_b"],
      params["w22"], params["b22"])
    return out


# --------------------------- parameter init -----------------------------------
def init_params(key, nfeat, nhid, nclass):
    specs = [
        # SAGEConv 1 / 2: fused [fc_self; fc_neigh] weight + bias
        ("w1", (2 * nfeat, nhid)), ("b1", (1, nhid)),
        ("w2", (2 * nhid, nhid)), ("b2", (1, nhid)),
        # GATConv (fc, attn_l, attn_r, bias), 1 head
        ("wg", (nhid, nhid)), ("attn_l", (1, nhid)), ("attn_r", (1, nhid)), ("bg", (1, nhid)),
        # BiLSTM layer 0: input-hidden weights of both directions fused on the
        # output axis (fwd gates lanes 0:4C, bwd lanes 4C:8C); gate order (i,f,g,o)
        ("l0_wih", (nhid, 8 * nclass)), ("l0_whh_f", (nclass, 4 * nclass)),
        ("l0_whh_b", (nclass, 4 * nclass)), ("l0_b", (1, 8 * nclass)),
        # BiLSTM layer 1: input-hidden weight split by input half (layer-0 fwd /
        # bwd output halves), both directions fused on the output axis
        ("l1_wih_fin", (nclass, 8 * nclass)), ("l1_wih_bin", (nclass, 8 * nclass)),
        ("l1_whh_f", (nclass, 4 * nclass)), ("l1_whh_b", (nclass, 4 * nclass)),
        ("l1_b", (1, 8 * nclass)),
        # linear22
        ("w22", (2 * nclass, nclass)), ("b22", (1, nclass)),
    ]
    keys = jax.random.split(key, len(specs))
    return {name: 0.1 * jax.random.normal(k, shape, jnp.float32)
            for (name, shape), k in zip(specs, keys)}


# ------------------------------- main ------------------------------------------
if __name__ == "__main__":
    key = jax.random.PRNGKey(0)
    kx, ka, kp = jax.random.split(key, 3)

    # x: [N, T, nfeat]   adj: [N, T, N]  (zero diagonal; self-loops added later)
    x = jax.random.normal(kx, (N_NODES, T_STEPS, NFEAT), jnp.float32)
    rand_adj = (jax.random.uniform(ka, (N_NODES, T_STEPS, N_NODES)) > 0.5).astype(jnp.float32)
    adj = rand_adj * (1.0 - jnp.eye(N_NODES, dtype=jnp.float32)[:, None, :])

    params = init_params(kp, NFEAT, NHID, NCLASS)

    fwd = jax.jit(mygnn_forward)
    out = jax.block_until_ready(fwd(x, adj, params))

    assert out.shape == (N_NODES, NCLASS)
    assert bool(jnp.all(jnp.isfinite(out)))
    # rows of log_softmax must sum to ~1 after exp
    assert bool(jnp.allclose(jnp.sum(jnp.exp(out), axis=1), 1.0, atol=1e-4))
    print("KERNEL_OK")
</pallas_src>

<mosaic_0001>
module attributes {stable_mosaic.version = 11 : i64} {
  func.func @fused_gnn_kernel(%arg0: memref<24x16xf32, #tpu.memory_space<vmem>>, %arg1: memref<24x24xf32, #tpu.memory_space<vmem>>, %arg2: memref<24x24xf32, #tpu.memory_space<vmem>>, %arg3: memref<32x8xf32, #tpu.memory_space<vmem>>, %arg4: memref<1x8xf32, #tpu.memory_space<vmem>>, %arg5: memref<16x8xf32, #tpu.memory_space<vmem>>, %arg6: memref<1x8xf32, #tpu.memory_space<vmem>>, %arg7: memref<8x8xf32, #tpu.memory_space<vmem>>, %arg8: memref<1x8xf32, #tpu.memory_space<vmem>>, %arg9: memref<1x8xf32, #tpu.memory_space<vmem>>, %arg10: memref<1x8xf32, #tpu.memory_space<vmem>>, %arg11: memref<8x64xf32, #tpu.memory_space<vmem>>, %arg12: memref<8x32xf32, #tpu.memory_space<vmem>>, %arg13: memref<8x32xf32, #tpu.memory_space<vmem>>, %arg14: memref<1x64xf32, #tpu.memory_space<vmem>>, %arg15: memref<8x64xf32, #tpu.memory_space<vmem>>, %arg16: memref<8x64xf32, #tpu.memory_space<vmem>>, %arg17: memref<8x32xf32, #tpu.memory_space<vmem>>, %arg18: memref<1x64xf32, #tpu.memory_space<vmem>>, %arg19: memref<16x8xf32, #tpu.memory_space<vmem>>, %arg20: memref<1x8xf32, #tpu.memory_space<vmem>>, %arg21: memref<8x8xf32, #tpu.memory_space<vmem>>, %arg22: memref<24x8xf32, #tpu.memory_space<vmem>>, %arg23: memref<24x8xf32, #tpu.memory_space<vmem>>) attributes {dimension_semantics = [], scalar_prefetch = 0 : i64, scratch_operands = 2 : i64, tpu.core_type = #tpu.core_type<tc>} {
    %c0 = arith.constant 0 : index
    %c0_0 = arith.constant 0 : index
    %0 = vector.load %arg0[%c0, %c0_0] : memref<24x16xf32, #tpu.memory_space<vmem>>, vector<24x16xf32>
    %c0_1 = arith.constant 0 : index
    %c0_2 = arith.constant 0 : index
    %1 = vector.load %arg1[%c0_1, %c0_2] : memref<24x24xf32, #tpu.memory_space<vmem>>, vector<24x24xf32>
    %c0_3 = arith.constant 0 : index
    %c0_4 = arith.constant 0 : index
    %2 = vector.load %arg2[%c0_3, %c0_4] : memref<24x24xf32, #tpu.memory_space<vmem>>, vector<24x24xf32>
    %cst = arith.constant dense<0.000000e+00> : vector<24x16xf32>
    %3 = tpu.matmul %1, %0, %cst {dimension_numbers = #tpu.dot_dimension_numbers<[1], [0], [0], [1], [0, 0, 1, 1], [], []>} : vector<24x24xf32>, vector<24x16xf32>, vector<24x16xf32> -> vector<24x16xf32>
    %4 = tpu.concatenate %0, %3 in 1 : vector<24x16xf32>, vector<24x16xf32> -> vector<24x32xf32>
    %c0_5 = arith.constant 0 : index
    %c0_6 = arith.constant 0 : index
    %5 = vector.load %arg3[%c0_5, %c0_6] : memref<32x8xf32, #tpu.memory_space<vmem>>, vector<32x8xf32>
    %cst_7 = arith.constant dense<0.000000e+00> : vector<24x8xf32>
    %6 = tpu.matmul %4, %5, %cst_7 {dimension_numbers = #tpu.dot_dimension_numbers<[1], [0], [0], [1], [0, 0, 1, 1], [], []>} : vector<24x32xf32>, vector<32x8xf32>, vector<24x8xf32> -> vector<24x8xf32>
    %c0_8 = arith.constant 0 : index
    %c0_9 = arith.constant 0 : index
    %7 = vector.load %arg4[%c0_8, %c0_9] : memref<1x8xf32, #tpu.memory_space<vmem>>, vector<1x8xf32>
    %8 = vector.broadcast %7 : vector<1x8xf32> to vector<24x8xf32>
    %9 = arith.addf %6, %8 : vector<24x8xf32>
    %cst_10 = arith.constant 0.000000e+00 : f32
    %10 = vector.broadcast %cst_10 : f32 to vector<24x8xf32>
    %11 = arith.maximumf %9, %10 : vector<24x8xf32>
    %cst_11 = arith.constant dense<0.000000e+00> : vector<24x8xf32>
    %12 = tpu.matmul %1, %11, %cst_11 {dimension_numbers = #tpu.dot_dimension_numbers<[1], [0], [0], [1], [0, 0, 1, 1], [], []>} : vector<24x24xf32>, vector<24x8xf32>, vector<24x8xf32> -> vector<24x8xf32>
    %13 = tpu.concatenate %11, %12 in 1 : vector<24x8xf32>, vector<24x8xf32> -> vector<24x16xf32>
    %c0_12 = arith.constant 0 : index
    %c0_13 = arith.constant 0 : index
    %14 = vector.load %arg5[%c0_12, %c0_13] : memref<16x8xf32, #tpu.memory_space<vmem>>, vector<16x8xf32>
    %cst_14 = arith.constant dense<0.000000e+00> : vector<24x8xf32>
    %15 = tpu.matmul %13, %14, %cst_14 {dimension_numbers = #tpu.dot_dimension_numbers<[1], [0], [0], [1], [0, 0, 1, 1], [], []>} : vector<24x16xf32>, vector<16x8xf32>, vector<24x8xf32> -> vector<24x8xf32>
    %c0_15 = arith.constant 0 : index
    %c0_16 = arith.constant 0 : index
    %16 = vector.load %arg6[%c0_15, %c0_16] : memref<1x8xf32, #tpu.memory_space<vmem>>, vector<1x8xf32>
    %17 = vector.broadcast %16 : vector<1x8xf32> to vector<24x8xf32>
    %18 = arith.addf %15, %17 : vector<24x8xf32>
    %c0_17 = arith.constant 0 : index
    %c0_18 = arith.constant 0 : index
    %19 = vector.load %arg7[%c0_17, %c0_18] : memref<8x8xf32, #tpu.memory_space<vmem>>, vector<8x8xf32>
    %cst_19 = arith.constant dense<0.000000e+00> : vector<24x8xf32>
    %20 = tpu.matmul %18, %19, %cst_19 {dimension_numbers = #tpu.dot_dimension_numbers<[1], [0], [0], [1], [0, 0, 1, 1], [], []>} : vector<24x8xf32>, vector<8x8xf32>, vector<24x8xf32> -> vector<24x8xf32>
    %c0_20 = arith.constant 0 : index
    %c0_21 = arith.constant 0 : index
    %21 = vector.load %arg8[%c0_20, %c0_21] : memref<1x8xf32, #tpu.memory_space<vmem>>, vector<1x8xf32>
    %22 = vector.broadcast %21 : vector<1x8xf32> to vector<24x8xf32>
    %23 = arith.mulf %20, %22 : vector<24x8xf32>
    %cst_22 = arith.constant dense<0.000000e+00> : vector<24xf32>
    %24 = vector.multi_reduction <add>, %23, %cst_22 [1] : vector<24x8xf32> to vector<24xf32>
    %25 = vector.shape_cast %24 : vector<24xf32> to vector<24x1xf32>
    %c0_23 = arith.constant 0 : index
    %c0_24 = arith.constant 0 : index
    %26 = vector.load %arg9[%c0_23, %c0_24] : memref<1x8xf32, #tpu.memory_space<vmem>>, vector<1x8xf32>
    %27 = vector.broadcast %26 : vector<1x8xf32> to vector<24x8xf32>
    %28 = arith.mulf %20, %27 : vector<24x8xf32>
    %cst_25 = arith.constant dense<0.000000e+00> : vector<24xf32>
    %29 = vector.multi_reduction <add>, %28, %cst_25 [1] : vector<24x8xf32> to vector<24xf32>
    %30 = vector.shape_cast %29 : vector<24xf32> to vector<24x1xf32>
    %31 = vector.shape_cast %25 : vector<24x1xf32> to vector<24x1xf32>
    %32 = vector.broadcast %31 : vector<24x1xf32> to vector<24x24xf32>
    %33 = tpu.transpose %32, [1, 0] : vector<24x24xf32> -> vector<24x24xf32>
    %34 = vector.broadcast %30 : vector<24x1xf32> to vector<24x24xf32>
    %35 = arith.addf %34, %33 : vector<24x24xf32>
    %cst_26 = arith.constant 0.000000e+00 : f32
    %36 = vector.broadcast %cst_26 : f32 to vector<24x24xf32>
    %37 = arith.cmpf ogt, %35, %36 : vector<24x24xf32>
    %cst_27 = arith.constant 2.000000e-01 : f32
    %38 = vector.broadcast %cst_27 : f32 to vector<24x24xf32>
    %39 = arith.mulf %38, %35 : vector<24x24xf32>
    %40 = arith.select %37, %35, %39 : vector<24x24xi1>, vector<24x24xf32>
    %cst_28 = arith.constant 0.000000e+00 : f32
    %41 = vector.broadcast %cst_28 : f32 to vector<24x24xf32>
    %42 = arith.cmpf ogt, %2, %41 : vector<24x24xf32>
    %cst_29 = arith.constant -1.000000e+30 : f32
    %43 = vector.broadcast %cst_29 : f32 to vector<24x24xf32>
    %44 = arith.select %42, %40, %43 : vector<24x24xi1>, vector<24x24xf32>
    %cst_30 = arith.constant dense<0xFF800000> : vector<24xf32>
    %45 = vector.multi_reduction <maximumf>, %44, %cst_30 [1] : vector<24x24xf32> to vector<24xf32>
    %46 = vector.shape_cast %45 : vector<24xf32> to vector<24x1xf32>
    %47 = vector.broadcast %46 : vector<24x1xf32> to vector<24x24xf32>
    %48 = arith.subf %44, %47 : vector<24x24xf32>
    %49 = math.exp %48 : vector<24x24xf32>
    %cst_31 = arith.constant dense<0.000000e+00> : vector<24xf32>
    %50 = vector.multi_reduction <add>, %49, %cst_31 [1] : vector<24x24xf32> to vector<24xf32>
    %51 = vector.shape_cast %50 : vector<24xf32> to vector<24x1xf32>
    %52 = tpu.reciprocal %51 {approx = true} : vector<24x1xf32> -> vector<24x1xf32>
    %53 = vector.broadcast %52 : vector<24x1xf32> to vector<24x24xf32>
    %54 = arith.mulf %49, %53 : vector<24x24xf32>
    %cst_32 = arith.constant dense<0.000000e+00> : vector<24x8xf32>
    %55 = tpu.matmul %54, %20, %cst_32 {dimension_numbers = #tpu.dot_dimension_numbers<[1], [0], [0], [1], [0, 0, 1, 1], [], []>} : vector<24x24xf32>, vector<24x8xf32>, vector<24x8xf32> -> vector<24x8xf32>
    %c0_33 = arith.constant 0 : index
    %c0_34 = arith.constant 0 : index
    %56 = vector.load %arg10[%c0_33, %c0_34] : memref<1x8xf32, #tpu.memory_space<vmem>>, vector<1x8xf32>
    %57 = vector.broadcast %56 : vector<1x8xf32> to vector<24x8xf32>
    %58 = arith.addf %55, %57 : vector<24x8xf32>
    %cst_35 = arith.constant 0.000000e+00 : f32
    %59 = vector.broadcast %cst_35 : f32 to vector<8x8xf32>
    %c0_36 = arith.constant 0 : index
    %c0_37 = arith.constant 0 : index
    %60 = vector.load %arg11[%c0_36, %c0_37] : memref<8x64xf32, #tpu.memory_space<vmem>>, vector<8x64xf32>
    %cst_38 = arith.constant dense<0.000000e+00> : vector<24x64xf32>
    %61 = tpu.matmul %58, %60, %cst_38 {dimension_numbers = #tpu.dot_dimension_numbers<[1], [0], [0], [1], [0, 0, 1, 1], [], []>} : vector<24x8xf32>, vector<8x64xf32>, vector<24x64xf32> -> vector<24x64xf32>
    %c0_39 = arith.constant 0 : index
    %c0_40 = arith.constant 0 : index
    %62 = vector.load %arg14[%c0_39, %c0_40] : memref<1x64xf32, #tpu.memory_space<vmem>>, vector<1x64xf32>
    %63 = vector.broadcast %62 : vector<1x64xf32> to vector<24x64xf32>
    %64 = arith.addf %61, %63 : vector<24x64xf32>
    %c0_41 = arith.constant 0 : index
    %c0_42 = arith.constant 0 : index
    %65 = vector.load %arg12[%c0_41, %c0_42] : memref<8x32xf32, #tpu.memory_space<vmem>>, vector<8x32xf32>
    %c0_43 = arith.constant 0 : index
    %c0_44 = arith.constant 0 : index
    %66 = vector.load %arg13[%c0_43, %c0_44] : memref<8x32xf32, #tpu.memory_space<vmem>>, vector<8x32xf32>
    %67 = vector.extract_strided_slice %64 {offsets = [0, 0], sizes = [8, 32], strides = [1, 1]} : vector<24x64xf32> to vector<8x32xf32>
    %cst_45 = arith.constant dense<0.000000e+00> : vector<8x32xf32>
    %68 = tpu.matmul %59, %65, %cst_45 {dimension_numbers = #tpu.dot_dimension_numbers<[1], [0], [0], [1], [0, 0, 1, 1], [], []>} : vector<8x8xf32>, vector<8x32xf32>, vector<8x32xf32> -> vector<8x32xf32>
    %69 = arith.addf %67, %68 : vector<8x32xf32>
    %70 = vector.extract_strided_slice %69 {offsets = [0, 0], sizes = [8, 8], strides = [1, 1]} : vector<8x32xf32> to vector<8x8xf32>
    %71 = arith.negf %70 : vector<8x8xf32>
    %72 = math.exp %71 : vector<8x8xf32>
    %cst_46 = arith.constant 1.000000e+00 : f32
    %73 = vector.broadcast %cst_46 : f32 to vector<8x8xf32>
    %74 = arith.addf %73, %72 : vector<8x8xf32>
    %75 = arith.divf %73, %74 : vector<8x8xf32>
    %76 = vector.extract_strided_slice %69 {offsets = [0, 8], sizes = [8, 8], strides = [1, 1]} : vector<8x32xf32> to vector<8x8xf32>
    %77 = arith.negf %76 : vector<8x8xf32>
    %78 = math.exp %77 : vector<8x8xf32>
    %cst_47 = arith.constant 1.000000e+00 : f32
    %79 = vector.broadcast %cst_47 : f32 to vector<8x8xf32>
    %80 = arith.addf %79, %78 : vector<8x8xf32>
    %81 = arith.divf %79, %80 : vector<8x8xf32>
    %82 = vector.extract_strided_slice %69 {offsets = [0, 16], sizes = [8, 8], strides = [1, 1]} : vector<8x32xf32> to vector<8x8xf32>
    %83 = math.tanh %82 : vector<8x8xf32>
    %84 = vector.extract_strided_slice %69 {offsets = [0, 24], sizes = [8, 8], strides = [1, 1]} : vector<8x32xf32> to vector<8x8xf32>
    %85 = arith.negf %84 : vector<8x8xf32>
    %86 = math.exp %85 : vector<8x8xf32>
    %cst_48 = arith.constant 1.000000e+00 : f32
    %87 = vector.broadcast %cst_48 : f32 to vector<8x8xf32>
    %88 = arith.addf %87, %86 : vector<8x8xf32>
    %89 = arith.divf %87, %88 : vector<8x8xf32>
    %90 = arith.mulf %81, %59 : vector<8x8xf32>
    %91 = arith.mulf %75, %83 : vector<8x8xf32>
    %92 = arith.addf %90, %91 : vector<8x8xf32>
    %93 = math.tanh %92 : vector<8x8xf32>
    %94 = arith.mulf %89, %93 : vector<8x8xf32>
    %c0_49 = arith.constant 0 : index
    %c0_50 = arith.constant 0 : index
    %95 = vector.load %arg22[%c0_49, %c0_50] : memref<24x8xf32, #tpu.memory_space<vmem>>, vector<8x8xf32>
    tpu.vector_store %arg22[%c0_49, %c0_50], %94 {strides = array<i32>} : memref<24x8xf32, #tpu.memory_space<vmem>>, vector<8x8xf32>,
    %96 = vector.extract_strided_slice %64 {offsets = [8, 0], sizes = [8, 32], strides = [1, 1]} : vector<24x64xf32> to vector<8x32xf32>
    %cst_51 = arith.constant dense<0.000000e+00> : vector<8x32xf32>
    %97 = tpu.matmul %94, %65, %cst_51 {dimension_numbers = #tpu.dot_dimension_numbers<[1], [0], [0], [1], [0, 0, 1, 1], [], []>} : vector<8x8xf32>, vector<8x32xf32>, vector<8x32xf32> -> vector<8x32xf32>
    %98 = arith.addf %96, %97 : vector<8x32xf32>
    %99 = vector.extract_strided_slice %98 {offsets = [0, 0], sizes = [8, 8], strides = [1, 1]} : vector<8x32xf32> to vector<8x8xf32>
    %100 = arith.negf %99 : vector<8x8xf32>
    %101 = math.exp %100 : vector<8x8xf32>
    %cst_52 = arith.constant 1.000000e+00 : f32
    %102 = vector.broadcast %cst_52 : f32 to vector<8x8xf32>
    %103 = arith.addf %102, %101 : vector<8x8xf32>
    %104 = arith.divf %102, %103 : vector<8x8xf32>
    %105 = vector.extract_strided_slice %98 {offsets = [0, 8], sizes = [8, 8], strides = [1, 1]} : vector<8x32xf32> to vector<8x8xf32>
    %106 = arith.negf %105 : vector<8x8xf32>
    %107 = math.exp %106 : vector<8x8xf32>
    %cst_53 = arith.constant 1.000000e+00 : f32
    %108 = vector.broadcast %cst_53 : f32 to vector<8x8xf32>
    %109 = arith.addf %108, %107 : vector<8x8xf32>
    %110 = arith.divf %108, %109 : vector<8x8xf32>
    %111 = vector.extract_strided_slice %98 {offsets = [0, 16], sizes = [8, 8], strides = [1, 1]} : vector<8x32xf32> to vector<8x8xf32>
    %112 = math.tanh %111 : vector<8x8xf32>
    %113 = vector.extract_strided_slice %98 {offsets = [0, 24], sizes = [8, 8], strides = [1, 1]} : vector<8x32xf32> to vector<8x8xf32>
    %114 = arith.negf %113 : vector<8x8xf32>
    %115 = math.exp %114 : vector<8x8xf32>
    %cst_54 = arith.constant 1.000000e+00 : f32
    %116 = vector.broadcast %cst_54 : f32 to vector<8x8xf32>
    %117 = arith.addf %116, %115 : vector<8x8xf32>
    %118 = arith.divf %116, %117 : vector<8x8xf32>
    %119 = arith.mulf %110, %92 : vector<8x8xf32>
    %120 = arith.mulf %104, %112 : vector<8x8xf32>
    %121 = arith.addf %119, %120 : vector<8x8xf32>
    %122 = math.tanh %121 : vector<8x8xf32>
    %123 = arith.mulf %118, %122 : vector<8x8xf32>
    %c8 = arith.constant 8 : index
    %c0_55 = arith.constant 0 : index
    %124 = vector.load %arg22[%c8, %c0_55] : memref<24x8xf32, #tpu.memory_space<vmem>>, vector<8x8xf32>
    tpu.vector_store %arg22[%c8, %c0_55], %123 {strides = array<i32>} : memref<24x8xf32, #tpu.memory_space<vmem>>, vector<8x8xf32>,
    %125 = vector.extract_strided_slice %64 {offsets = [16, 0], sizes = [8, 32], strides = [1, 1]} : vector<24x64xf32> to vector<8x32xf32>
    %cst_56 = arith.constant dense<0.000000e+00> : vector<8x32xf32>
    %126 = tpu.matmul %123, %65, %cst_56 {dimension_numbers = #tpu.dot_dimension_numbers<[1], [0], [0], [1], [0, 0, 1, 1], [], []>} : vector<8x8xf32>, vector<8x32xf32>, vector<8x32xf32> -> vector<8x32xf32>
    %127 = arith.addf %125, %126 : vector<8x32xf32>
    %128 = vector.extract_strided_slice %127 {offsets = [0, 0], sizes = [8, 8], strides = [1, 1]} : vector<8x32xf32> to vector<8x8xf32>
    %129 = arith.negf %128 : vector<8x8xf32>
    %130 = math.exp %129 : vector<8x8xf32>
    %cst_57 = arith.constant 1.000000e+00 : f32
    %131 = vector.broadcast %cst_57 : f32 to vector<8x8xf32>
    %132 = arith.addf %131, %130 : vector<8x8xf32>
    %133 = arith.divf %131, %132 : vector<8x8xf32>
    %134 = vector.extract_strided_slice %127 {offsets = [0, 8], sizes = [8, 8], strides = [1, 1]} : vector<8x32xf32> to vector<8x8xf32>
    %135 = arith.negf %134 : vector<8x8xf32>
    %136 = math.exp %135 : vector<8x8xf32>
    %cst_58 = arith.constant 1.000000e+00 : f32
    %137 = vector.broadcast %cst_58 : f32 to vector<8x8xf32>
    %138 = arith.addf %137, %136 : vector<8x8xf32>
    %139 = arith.divf %137, %138 : vector<8x8xf32>
    %140 = vector.extract_strided_slice %127 {offsets = [0, 16], sizes = [8, 8], strides = [1, 1]} : vector<8x32xf32> to vector<8x8xf32>
    %141 = math.tanh %140 : vector<8x8xf32>
    %142 = vector.extract_strided_slice %127 {offsets = [0, 24], sizes = [8, 8], strides = [1, 1]} : vector<8x32xf32> to vector<8x8xf32>
    %143 = arith.negf %142 : vector<8x8xf32>
    %144 = math.exp %143 : vector<8x8xf32>
    %cst_59 = arith.constant 1.000000e+00 : f32
    %145 = vector.broadcast %cst_59 : f32 to vector<8x8xf32>
    %146 = arith.addf %145, %144 : vector<8x8xf32>
    %147 = arith.divf %145, %146 : vector<8x8xf32>
    %148 = arith.mulf %139, %121 : vector<8x8xf32>
    %149 = arith.mulf %133, %141 : vector<8x8xf32>
    %150 = arith.addf %148, %149 : vector<8x8xf32>
    %151 = math.tanh %150 : vector<8x8xf32>
    %152 = arith.mulf %147, %151 : vector<8x8xf32>
    %c16 = arith.constant 16 : index
    %c0_60 = arith.constant 0 : index
    %153 = vector.load %arg22[%c16, %c0_60] : memref<24x8xf32, #tpu.memory_space<vmem>>, vector<8x8xf32>
    tpu.vector_store %arg22[%c16, %c0_60], %152 {strides = array<i32>} : memref<24x8xf32, #tpu.memory_space<vmem>>, vector<8x8xf32>,
    %154 = vector.extract_strided_slice %64 {offsets = [16, 32], sizes = [8, 32], strides = [1, 1]} : vector<24x64xf32> to vector<8x32xf32>
    %cst_61 = arith.constant dense<0.000000e+00> : vector<8x32xf32>
    %155 = tpu.matmul %59, %66, %cst_61 {dimension_numbers = #tpu.dot_dimension_numbers<[1], [0], [0], [1], [0, 0, 1, 1], [], []>} : vector<8x8xf32>, vector<8x32xf32>, vector<8x32xf32> -> vector<8x32xf32>
    %156 = arith.addf %154, %155 : vector<8x32xf32>
    %157 = vector.extract_strided_slice %156 {offsets = [0, 0], sizes = [8, 8], strides = [1, 1]} : vector<8x32xf32> to vector<8x8xf32>
    %158 = arith.negf %157 : vector<8x8xf32>
    %159 = math.exp %158 : vector<8x8xf32>
    %cst_62 = arith.constant 1.000000e+00 : f32
    %160 = vector.broadcast %cst_62 : f32 to vector<8x8xf32>
    %161 = arith.addf %160, %159 : vector<8x8xf32>
    %162 = arith.divf %160, %161 : vector<8x8xf32>
    %163 = vector.extract_strided_slice %156 {offsets = [0, 8], sizes = [8, 8], strides = [1, 1]} : vector<8x32xf32> to vector<8x8xf32>
    %164 = arith.negf %163 : vector<8x8xf32>
    %165 = math.exp %164 : vector<8x8xf32>
    %cst_63 = arith.constant 1.000000e+00 : f32
    %166 = vector.broadcast %cst_63 : f32 to vector<8x8xf32>
    %167 = arith.addf %166, %165 : vector<8x8xf32>
    %168 = arith.divf %166, %167 : vector<8x8xf32>
    %169 = vector.extract_strided_slice %156 {offsets = [0, 16], sizes = [8, 8], strides = [1, 1]} : vector<8x32xf32> to vector<8x8xf32>
    %170 = math.tanh %169 : vector<8x8xf32>
    %171 = vector.extract_strided_slice %156 {offsets = [0, 24], sizes = [8, 8], strides = [1, 1]} : vector<8x32xf32> to vector<8x8xf32>
    %172 = arith.negf %171 : vector<8x8xf32>
    %173 = math.exp %172 : vector<8x8xf32>
    %cst_64 = arith.constant 1.000000e+00 : f32
    %174 = vector.broadcast %cst_64 : f32 to vector<8x8xf32>
    %175 = arith.addf %174, %173 : vector<8x8xf32>
    %176 = arith.divf %174, %175 : vector<8x8xf32>
    %177 = arith.mulf %168, %59 : vector<8x8xf32>
    %178 = arith.mulf %162, %170 : vector<8x8xf32>
    %179 = arith.addf %177, %178 : vector<8x8xf32>
    %180 = math.tanh %179 : vector<8x8xf32>
    %181 = arith.mulf %176, %180 : vector<8x8xf32>
    %c16_65 = arith.constant 16 : index
    %c0_66 = arith.constant 0 : index
    %182 = vector.load %arg23[%c16_65, %c0_66] : memref<24x8xf32, #tpu.memory_space<vmem>>, vector<8x8xf32>
    tpu.vector_store %arg23[%c16_65, %c0_66], %181 {strides = array<i32>} : memref<24x8xf32, #tpu.memory_space<vmem>>, vector<8x8xf32>,
    %183 = vector.extract_strided_slice %64 {offsets = [8, 32], sizes = [8, 32], strides = [1, 1]} : vector<24x64xf32> to vector<8x32xf32>
    %cst_67 = arith.constant dense<0.000000e+00> : vector<8x32xf32>
    %184 = tpu.matmul %181, %66, %cst_67 {dimension_numbers = #tpu.dot_dimension_numbers<[1], [0], [0], [1], [0, 0, 1, 1], [], []>} : vector<8x8xf32>, vector<8x32xf32>, vector<8x32xf32> -> vector<8x32xf32>
    %185 = arith.addf %183, %184 : vector<8x32xf32>
    %186 = vector.extract_strided_slice %185 {offsets = [0, 0], sizes = [8, 8], strides = [1, 1]} : vector<8x32xf32> to vector<8x8xf32>
    %187 = arith.negf %186 : vector<8x8xf32>
    %188 = math.exp %187 : vector<8x8xf32>
    %cst_68 = arith.constant 1.000000e+00 : f32
    %189 = vector.broadcast %cst_68 : f32 to vector<8x8xf32>
    %190 = arith.addf %189, %188 : vector<8x8xf32>
    %191 = arith.divf %189, %190 : vector<8x8xf32>
    %192 = vector.extract_strided_slice %185 {offsets = [0, 8], sizes = [8, 8], strides = [1, 1]} : vector<8x32xf32> to vector<8x8xf32>
    %193 = arith.negf %192 : vector<8x8xf32>
    %194 = math.exp %193 : vector<8x8xf32>
    %cst_69 = arith.constant 1.000000e+00 : f32
    %195 = vector.broadcast %cst_69 : f32 to vector<8x8xf32>
    %196 = arith.addf %195, %194 : vector<8x8xf32>
    %197 = arith.divf %195, %196 : vector<8x8xf32>
    %198 = vector.extract_strided_slice %185 {offsets = [0, 16], sizes = [8, 8], strides = [1, 1]} : vector<8x32xf32> to vector<8x8xf32>
    %199 = math.tanh %198 : vector<8x8xf32>
    %200 = vector.extract_strided_slice %185 {offsets = [0, 24], sizes = [8, 8], strides = [1, 1]} : vector<8x32xf32> to vector<8x8xf32>
    %201 = arith.negf %200 : vector<8x8xf32>
    %202 = math.exp %201 : vector<8x8xf32>
    %cst_70 = arith.constant 1.000000e+00 : f32
    %203 = vector.broadcast %cst_70 : f32 to vector<8x8xf32>
    %204 = arith.addf %203, %202 : vector<8x8xf32>
    %205 = arith.divf %203, %204 : vector<8x8xf32>
    %206 = arith.mulf %197, %179 : vector<8x8xf32>
    %207 = arith.mulf %191, %199 : vector<8x8xf32>
    %208 = arith.addf %206, %207 : vector<8x8xf32>
    %209 = math.tanh %208 : vector<8x8xf32>
    %210 = arith.mulf %205, %209 : vector<8x8xf32>
    %c8_71 = arith.constant 8 : index
    %c0_72 = arith.constant 0 : index
    %211 = vector.load %arg23[%c8_71, %c0_72] : memref<24x8xf32, #tpu.memory_space<vmem>>, vector<8x8xf32>
    tpu.vector_store %arg23[%c8_71, %c0_72], %210 {strides = array<i32>} : memref<24x8xf32, #tpu.memory_space<vmem>>, vector<8x8xf32>,
    %212 = vector.extract_strided_slice %64 {offsets = [0, 32], sizes = [8, 32], strides = [1, 1]} : vector<24x64xf32> to vector<8x32xf32>
    %cst_73 = arith.constant dense<0.000000e+00> : vector<8x32xf32>
    %213 = tpu.matmul %210, %66, %cst_73 {dimension_numbers = #tpu.dot_dimension_numbers<[1], [0], [0], [1], [0, 0, 1, 1], [], []>} : vector<8x8xf32>, vector<8x32xf32>, vector<8x32xf32> -> vector<8x32xf32>
    %214 = arith.addf %212, %213 : vector<8x32xf32>
    %215 = vector.extract_strided_slice %214 {offsets = [0, 0], sizes = [8, 8], strides = [1, 1]} : vector<8x32xf32> to vector<8x8xf32>
    %216 = arith.negf %215 : vector<8x8xf32>
    %217 = math.exp %216 : vector<8x8xf32>
    %cst_74 = arith.constant 1.000000e+00 : f32
    %218 = vector.broadcast %cst_74 : f32 to vector<8x8xf32>
    %219 = arith.addf %218, %217 : vector<8x8xf32>
    %220 = arith.divf %218, %219 : vector<8x8xf32>
    %221 = vector.extract_strided_slice %214 {offsets = [0, 8], sizes = [8, 8], strides = [1, 1]} : vector<8x32xf32> to vector<8x8xf32>
    %222 = arith.negf %221 : vector<8x8xf32>
    %223 = math.exp %222 : vector<8x8xf32>
    %cst_75 = arith.constant 1.000000e+00 : f32
    %224 = vector.broadcast %cst_75 : f32 to vector<8x8xf32>
    %225 = arith.addf %224, %223 : vector<8x8xf32>
    %226 = arith.divf %224, %225 : vector<8x8xf32>
    %227 = vector.extract_strided_slice %214 {offsets = [0, 16], sizes = [8, 8], strides = [1, 1]} : vector<8x32xf32> to vector<8x8xf32>
    %228 = math.tanh %227 : vector<8x8xf32>
    %229 = vector.extract_strided_slice %214 {offsets = [0, 24], sizes = [8, 8], strides = [1, 1]} : vector<8x32xf32> to vector<8x8xf32>
    %230 = arith.negf %229 : vector<8x8xf32>
    %231 = math.exp %230 : vector<8x8xf32>
    %cst_76 = arith.constant 1.000000e+00 : f32
    %232 = vector.broadcast %cst_76 : f32 to vector<8x8xf32>
    %233 = arith.addf %232, %231 : vector<8x8xf32>
    %234 = arith.divf %232, %233 : vector<8x8xf32>
    %235 = arith.mulf %226, %208 : vector<8x8xf32>
    %236 = arith.mulf %220, %228 : vector<8x8xf32>
    %237 = arith.addf %235, %236 : vector<8x8xf32>
    %238 = math.tanh %237 : vector<8x8xf32>
    %239 = arith.mulf %234, %238 : vector<8x8xf32>
    %c0_77 = arith.constant 0 : index
    %c0_78 = arith.constant 0 : index
    %240 = vector.load %arg23[%c0_77, %c0_78] : memref<24x8xf32, #tpu.memory_space<vmem>>, vector<8x8xf32>
    tpu.vector_store %arg23[%c0_77, %c0_78], %239 {strides = array<i32>} : memref<24x8xf32, #tpu.memory_space<vmem>>, vector<8x8xf32>,
    %c0_79 = arith.constant 0 : index
    %c0_80 = arith.constant 0 : index
    %241 = vector.load %arg22[%c0_79, %c0_80] : memref<24x8xf32, #tpu.memory_space<vmem>>, vector<24x8xf32>
    %c0_81 = arith.constant 0 : index
    %c0_82 = arith.constant 0 : index
    %242 = vector.load %arg15[%c0_81, %c0_82] : memref<8x64xf32, #tpu.memory_space<vmem>>, vector<8x64xf32>
    %cst_83 = arith.constant dense<0.000000e+00> : vector<24x64xf32>
    %243 = tpu.matmul %241, %242, %cst_83 {dimension_numbers = #tpu.dot_dimension_numbers<[1], [0], [0], [1], [0, 0, 1, 1], [], []>} : vector<24x8xf32>, vector<8x64xf32>, vector<24x64xf32> -> vector<24x64xf32>
    %c0_84 = arith.constant 0 : index
    %c0_85 = arith.constant 0 : index
    %244 = vector.load %arg23[%c0_84, %c0_85] : memref<24x8xf32, #tpu.memory_space<vmem>>, vector<24x8xf32>
    %c0_86 = arith.constant 0 : index
    %c0_87 = arith.constant 0 : index
    %245 = vector.load %arg16[%c0_86, %c0_87] : memref<8x64xf32, #tpu.memory_space<vmem>>, vector<8x64xf32>
    %cst_88 = arith.constant dense<0.000000e+00> : vector<24x64xf32>
    %246 = tpu.matmul %244, %245, %cst_88 {dimension_numbers = #tpu.dot_dimension_numbers<[1], [0], [0], [1], [0, 0, 1, 1], [], []>} : vector<24x8xf32>, vector<8x64xf32>, vector<24x64xf32> -> vector<24x64xf32>
    %247 = arith.addf %243, %246 : vector<24x64xf32>
    %c0_89 = arith.constant 0 : index
    %c0_90 = arith.constant 0 : index
    %248 = vector.load %arg18[%c0_89, %c0_90] : memref<1x64xf32, #tpu.memory_space<vmem>>, vector<1x64xf32>
    %249 = vector.broadcast %248 : vector<1x64xf32> to vector<24x64xf32>
    %250 = arith.addf %247, %249 : vector<24x64xf32>
    %c0_91 = arith.constant 0 : index
    %c0_92 = arith.constant 0 : index
    %251 = vector.load %arg17[%c0_91, %c0_92] : memref<8x32xf32, #tpu.memory_space<vmem>>, vector<8x32xf32>
    %252 = vector.extract_strided_slice %250 {offsets = [0, 0], sizes = [8, 32], strides = [1, 1]} : vector<24x64xf32> to vector<8x32xf32>
    %cst_93 = arith.constant dense<0.000000e+00> : vector<8x32xf32>
    %253 = tpu.matmul %59, %251, %cst_93 {dimension_numbers = #tpu.dot_dimension_numbers<[1], [0], [0], [1], [0, 0, 1, 1], [], []>} : vector<8x8xf32>, vector<8x32xf32>, vector<8x32xf32> -> vector<8x32xf32>
    %254 = arith.addf %252, %253 : vector<8x32xf32>
    %255 = vector.extract_strided_slice %254 {offsets = [0, 0], sizes = [8, 8], strides = [1, 1]} : vector<8x32xf32> to vector<8x8xf32>
    %256 = arith.negf %255 : vector<8x8xf32>
    %257 = math.exp %256 : vector<8x8xf32>
    %cst_94 = arith.constant 1.000000e+00 : f32
    %258 = vector.broadcast %cst_94 : f32 to vector<8x8xf32>
    %259 = arith.addf %258, %257 : vector<8x8xf32>
    %260 = arith.divf %258, %259 : vector<8x8xf32>
    %261 = vector.extract_strided_slice %254 {offsets = [0, 8], sizes = [8, 8], strides = [1, 1]} : vector<8x32xf32> to vector<8x8xf32>
    %262 = arith.negf %261 : vector<8x8xf32>
    %263 = math.exp %262 : vector<8x8xf32>
    %cst_95 = arith.constant 1.000000e+00 : f32
    %264 = vector.broadcast %cst_95 : f32 to vector<8x8xf32>
    %265 = arith.addf %264, %263 : vector<8x8xf32>
    %266 = arith.divf %264, %265 : vector<8x8xf32>
    %267 = vector.extract_strided_slice %254 {offsets = [0, 16], sizes = [8, 8], strides = [1, 1]} : vector<8x32xf32> to vector<8x8xf32>
    %268 = math.tanh %267 : vector<8x8xf32>
    %269 = vector.extract_strided_slice %254 {offsets = [0, 24], sizes = [8, 8], strides = [1, 1]} : vector<8x32xf32> to vector<8x8xf32>
    %270 = arith.negf %269 : vector<8x8xf32>
    %271 = math.exp %270 : vector<8x8xf32>
    %cst_96 = arith.constant 1.000000e+00 : f32
    %272 = vector.broadcast %cst_96 : f32 to vector<8x8xf32>
    %273 = arith.addf %272, %271 : vector<8x8xf32>
    %274 = arith.divf %272, %273 : vector<8x8xf32>
    %275 = arith.mulf %266, %59 : vector<8x8xf32>
    %276 = arith.mulf %260, %268 : vector<8x8xf32>
    %277 = arith.addf %275, %276 : vector<8x8xf32>
    %278 = math.tanh %277 : vector<8x8xf32>
    %279 = arith.mulf %274, %278 : vector<8x8xf32>
    %280 = vector.extract_strided_slice %250 {offsets = [8, 0], sizes = [8, 32], strides = [1, 1]} : vector<24x64xf32> to vector<8x32xf32>
    %cst_97 = arith.constant dense<0.000000e+00> : vector<8x32xf32>
    %281 = tpu.matmul %279, %251, %cst_97 {dimension_numbers = #tpu.dot_dimension_numbers<[1], [0], [0], [1], [0, 0, 1, 1], [], []>} : vector<8x8xf32>, vector<8x32xf32>, vector<8x32xf32> -> vector<8x32xf32>
    %282 = arith.addf %280, %281 : vector<8x32xf32>
    %283 = vector.extract_strided_slice %282 {offsets = [0, 0], sizes = [8, 8], strides = [1, 1]} : vector<8x32xf32> to vector<8x8xf32>
    %284 = arith.negf %283 : vector<8x8xf32>
    %285 = math.exp %284 : vector<8x8xf32>
    %cst_98 = arith.constant 1.000000e+00 : f32
    %286 = vector.broadcast %cst_98 : f32 to vector<8x8xf32>
    %287 = arith.addf %286, %285 : vector<8x8xf32>
    %288 = arith.divf %286, %287 : vector<8x8xf32>
    %289 = vector.extract_strided_slice %282 {offsets = [0, 8], sizes = [8, 8], strides = [1, 1]} : vector<8x32xf32> to vector<8x8xf32>
    %290 = arith.negf %289 : vector<8x8xf32>
    %291 = math.exp %290 : vector<8x8xf32>
    %cst_99 = arith.constant 1.000000e+00 : f32
    %292 = vector.broadcast %cst_99 : f32 to vector<8x8xf32>
    %293 = arith.addf %292, %291 : vector<8x8xf32>
    %294 = arith.divf %292, %293 : vector<8x8xf32>
    %295 = vector.extract_strided_slice %282 {offsets = [0, 16], sizes = [8, 8], strides = [1, 1]} : vector<8x32xf32> to vector<8x8xf32>
    %296 = math.tanh %295 : vector<8x8xf32>
    %297 = vector.extract_strided_slice %282 {offsets = [0, 24], sizes = [8, 8], strides = [1, 1]} : vector<8x32xf32> to vector<8x8xf32>
    %298 = arith.negf %297 : vector<8x8xf32>
    %299 = math.exp %298 : vector<8x8xf32>
    %cst_100 = arith.constant 1.000000e+00 : f32
    %300 = vector.broadcast %cst_100 : f32 to vector<8x8xf32>
    %301 = arith.addf %300, %299 : vector<8x8xf32>
    %302 = arith.divf %300, %301 : vector<8x8xf32>
    %303 = arith.mulf %294, %277 : vector<8x8xf32>
    %304 = arith.mulf %288, %296 : vector<8x8xf32>
    %305 = arith.addf %303, %304 : vector<8x8xf32>
    %306 = math.tanh %305 : vector<8x8xf32>
    %307 = arith.mulf %302, %306 : vector<8x8xf32>
    %308 = vector.extract_strided_slice %250 {offsets = [16, 0], sizes = [8, 32], strides = [1, 1]} : vector<24x64xf32> to vector<8x32xf32>
    %cst_101 = arith.constant dense<0.000000e+00> : vector<8x32xf32>
    %309 = tpu.matmul %307, %251, %cst_101 {dimension_numbers = #tpu.dot_dimension_numbers<[1], [0], [0], [1], [0, 0, 1, 1], [], []>} : vector<8x8xf32>, vector<8x32xf32>, vector<8x32xf32> -> vector<8x32xf32>
    %310 = arith.addf %308, %309 : vector<8x32xf32>
    %311 = vector.extract_strided_slice %310 {offsets = [0, 0], sizes = [8, 8], strides = [1, 1]} : vector<8x32xf32> to vector<8x8xf32>
    %312 = arith.negf %311 : vector<8x8xf32>
    %313 = math.exp %312 : vector<8x8xf32>
    %cst_102 = arith.constant 1.000000e+00 : f32
    %314 = vector.broadcast %cst_102 : f32 to vector<8x8xf32>
    %315 = arith.addf %314, %313 : vector<8x8xf32>
    %316 = arith.divf %314, %315 : vector<8x8xf32>
    %317 = vector.extract_strided_slice %310 {offsets = [0, 8], sizes = [8, 8], strides = [1, 1]} : vector<8x32xf32> to vector<8x8xf32>
    %318 = arith.negf %317 : vector<8x8xf32>
    %319 = math.exp %318 : vector<8x8xf32>
    %cst_103 = arith.constant 1.000000e+00 : f32
    %320 = vector.broadcast %cst_103 : f32 to vector<8x8xf32>
    %321 = arith.addf %320, %319 : vector<8x8xf32>
    %322 = arith.divf %320, %321 : vector<8x8xf32>
    %323 = vector.extract_strided_slice %310 {offsets = [0, 16], sizes = [8, 8], strides = [1, 1]} : vector<8x32xf32> to vector<8x8xf32>
    %324 = math.tanh %323 : vector<8x8xf32>
    %325 = vector.extract_strided_slice %310 {offsets = [0, 24], sizes = [8, 8], strides = [1, 1]} : vector<8x32xf32> to vector<8x8xf32>
    %326 = arith.negf %325 : vector<8x8xf32>
    %327 = math.exp %326 : vector<8x8xf32>
    %cst_104 = arith.constant 1.000000e+00 : f32
    %328 = vector.broadcast %cst_104 : f32 to vector<8x8xf32>
    %329 = arith.addf %328, %327 : vector<8x8xf32>
    %330 = arith.divf %328, %329 : vector<8x8xf32>
    %331 = arith.mulf %322, %305 : vector<8x8xf32>
    %332 = arith.mulf %316, %324 : vector<8x8xf32>
    %333 = arith.addf %331, %332 : vector<8x8xf32>
    %334 = math.tanh %333 : vector<8x8xf32>
    %335 = arith.mulf %330, %334 : vector<8x8xf32>
    %336 = vector.extract_strided_slice %250 {offsets = [16, 32], sizes = [8, 32], strides = [1, 1]} : vector<24x64xf32> to vector<8x32xf32>
    %337 = vector.extract_strided_slice %336 {offsets = [0, 0], sizes = [8, 8], strides = [1, 1]} : vector<8x32xf32> to vector<8x8xf32>
    %338 = arith.negf %337 : vector<8x8xf32>
    %339 = math.exp %338 : vector<8x8xf32>
    %cst_105 = arith.constant 1.000000e+00 : f32
    %340 = vector.broadcast %cst_105 : f32 to vector<8x8xf32>
    %341 = arith.addf %340, %339 : vector<8x8xf32>
    %342 = arith.divf %340, %341 : vector<8x8xf32>
    %343 = vector.extract_strided_slice %336 {offsets = [0, 8], sizes = [8, 8], strides = [1, 1]} : vector<8x32xf32> to vector<8x8xf32>
    %344 = arith.negf %343 : vector<8x8xf32>
    %345 = math.exp %344 : vector<8x8xf32>
    %cst_106 = arith.constant 1.000000e+00 : f32
    %346 = vector.broadcast %cst_106 : f32 to vector<8x8xf32>
    %347 = arith.addf %346, %345 : vector<8x8xf32>
    %348 = arith.divf %346, %347 : vector<8x8xf32>
    %349 = vector.extract_strided_slice %336 {offsets = [0, 16], sizes = [8, 8], strides = [1, 1]} : vector<8x32xf32> to vector<8x8xf32>
    %350 = math.tanh %349 : vector<8x8xf32>
    %351 = vector.extract_strided_slice %336 {offsets = [0, 24], sizes = [8, 8], strides = [1, 1]} : vector<8x32xf32> to vector<8x8xf32>
    %352 = arith.negf %351 : vector<8x8xf32>
    %353 = math.exp %352 : vector<8x8xf32>
    %cst_107 = arith.constant 1.000000e+00 : f32
    %354 = vector.broadcast %cst_107 : f32 to vector<8x8xf32>
    %355 = arith.addf %354, %353 : vector<8x8xf32>
    %356 = arith.divf %354, %355 : vector<8x8xf32>
    %357 = arith.mulf %348, %59 : vector<8x8xf32>
    %358 = arith.mulf %342, %350 : vector<8x8xf32>
    %359 = arith.addf %357, %358 : vector<8x8xf32>
    %360 = math.tanh %359 : vector<8x8xf32>
    %361 = arith.mulf %356, %360 : vector<8x8xf32>
    %c0_108 = arith.constant 0 : index
    %c0_109 = arith.constant 0 : index
    %362 = vector.load %arg19[%c0_108, %c0_109] : memref<16x8xf32, #tpu.memory_space<vmem>>, vector<16x8xf32>
    %363 = vector.extract_strided_slice %362 {offsets = [0, 0], sizes = [8, 8], strides = [1, 1]} : vector<16x8xf32> to vector<8x8xf32>
    %cst_110 = arith.constant dense<0.000000e+00> : vector<8x8xf32>
    %364 = tpu.matmul %335, %363, %cst_110 {dimension_numbers = #tpu.dot_dimension_numbers<[1], [0], [0], [1], [0, 0, 1, 1], [], []>} : vector<8x8xf32>, vector<8x8xf32>, vector<8x8xf32> -> vector<8x8xf32>
    %365 = vector.extract_strided_slice %362 {offsets = [8, 0], sizes = [8, 8], strides = [1, 1]} : vector<16x8xf32> to vector<8x8xf32>
    %cst_111 = arith.constant dense<0.000000e+00> : vector<8x8xf32>
    %366 = tpu.matmul %361, %365, %cst_111 {dimension_numbers = #tpu.dot_dimension_numbers<[1], [0], [0], [1], [0, 0, 1, 1], [], []>} : vector<8x8xf32>, vector<8x8xf32>, vector<8x8xf32> -> vector<8x8xf32>
    %367 = arith.addf %364, %366 : vector<8x8xf32>
    %c0_112 = arith.constant 0 : index
    %c0_113 = arith.constant 0 : index
    %368 = vector.load %arg20[%c0_112, %c0_113] : memref<1x8xf32, #tpu.memory_space<vmem>>, vector<1x8xf32>
    %369 = vector.broadcast %368 : vector<1x8xf32> to vector<8x8xf32>
    %370 = arith.addf %367, %369 : vector<8x8xf32>
    %cst_114 = arith.constant dense<0xFF800000> : vector<8xf32>
    %371 = vector.multi_reduction <maximumf>, %370, %cst_114 [1] : vector<8x8xf32> to vector<8xf32>
    %372 = vector.shape_cast %371 : vector<8xf32> to vector<8x1xf32>
    %373 = vector.broadcast %372 : vector<8x1xf32> to vector<8x8xf32>
    %374 = arith.subf %370, %373 : vector<8x8xf32>
    %375 = math.exp %374 : vector<8x8xf32>
    %cst_115 = arith.constant dense<0.000000e+00> : vector<8xf32>
    %376 = vector.multi_reduction <add>, %375, %cst_115 [1] : vector<8x8xf32> to vector<8xf32>
    %377 = vector.shape_cast %376 : vector<8xf32> to vector<8x1xf32>
    %378 = math.log %377 : vector<8x1xf32>
    %379 = vector.broadcast %378 : vector<8x1xf32> to vector<8x8xf32>
    %380 = arith.subf %374, %379 : vector<8x8xf32>
    %c0_116 = arith.constant 0 : index
    %c0_117 = arith.constant 0 : index
    %381 = vector.load %arg21[%c0_116, %c0_117] : memref<8x8xf32, #tpu.memory_space<vmem>>, vector<8x8xf32>
    tpu.vector_store %arg21[%c0_116, %c0_117], %380 {strides = array<i32>} : memref<8x8xf32, #tpu.memory_space<vmem>>, vector<8x8xf32>,
    return
  }
}

</mosaic_0001>

<llo_original>
// kernel: mygnn_forward.1
$region0: #{mygnn_forward.1}
  #allocation0 [shape = 'u32[]', space=smem, size = 0x4, offset = 0x4, fixed_abs, tag = 'smem constant byte address 0x4 - core index']
  #allocation1 [shape = 'u32[144,128]{1,0:T(1,128)}', space=vmem, size = 0x12000, scoped, tag = 'internal scratch']
  #allocation2 [shape = 'f32[24,8]{1,0:T(8,128)}', space=vmem, size = 0x3000, scoped, tag = 'scratch operand']
  #allocation3 [shape = 'f32[24,8]{1,0:T(8,128)}', space=vmem, size = 0x3000, scoped, tag = 'scratch operand']
  %s0 = inlined_call_operand.vmem [shape: f32[24,16], index: 0, kind: input, shape index: {}]
  %s1 = inlined_call_operand.vmem [shape: f32[24,24], index: 1, kind: input, shape index: {}]
  %s2 = inlined_call_operand.vmem [shape: f32[24,24], index: 2, kind: input, shape index: {}]
  %s3 = inlined_call_operand.vmem [shape: f32[32,8], index: 3, kind: input, shape index: {}]
  %s4 = inlined_call_operand.vmem [shape: f32[1,8], index: 4, kind: input, shape index: {}]
  %s5 = inlined_call_operand.vmem [shape: f32[16,8], index: 5, kind: input, shape index: {}]
  %s6 = inlined_call_operand.vmem [shape: f32[1,8], index: 6, kind: input, shape index: {}]
  %s7 = inlined_call_operand.vmem [shape: f32[8,8], index: 7, kind: input, shape index: {}]
  %s8 = inlined_call_operand.vmem [shape: f32[1,8], index: 8, kind: input, shape index: {}]
  %s9 = inlined_call_operand.vmem [shape: f32[1,8], index: 9, kind: input, shape index: {}]
  %s10 = inlined_call_operand.vmem [shape: f32[1,8], index: 10, kind: input, shape index: {}]
  %s11 = inlined_call_operand.vmem [shape: f32[8,64], index: 11, kind: input, shape index: {}]
  %s12 = inlined_call_operand.vmem [shape: f32[8,32], index: 12, kind: input, shape index: {}]
  %s13 = inlined_call_operand.vmem [shape: f32[8,32], index: 13, kind: input, shape index: {}]
  %s14 = inlined_call_operand.vmem [shape: f32[1,64], index: 14, kind: input, shape index: {}]
  %s15 = inlined_call_operand.vmem [shape: f32[8,64], index: 15, kind: input, shape index: {}]
  %s16 = inlined_call_operand.vmem [shape: f32[8,64], index: 16, kind: input, shape index: {}]
  %s17 = inlined_call_operand.vmem [shape: f32[8,32], index: 17, kind: input, shape index: {}]
  %s18 = inlined_call_operand.vmem [shape: f32[1,64], index: 18, kind: input, shape index: {}]
  %s19 = inlined_call_operand.vmem [shape: f32[16,8], index: 19, kind: input, shape index: {}]
  %s20 = inlined_call_operand.vmem [shape: f32[1,8], index: 20, kind: input, shape index: {}]
  %s21 = inlined_call_operand.hbm [shape: f32[8,8], index: 21, kind: output, shape index: {}]
  %s22 = sld [smem:[#allocation0]]
  $region94: #{mygnn_forward.1} parent=0
    _
  %s24 = ssub.s32 1, %s22
  %s25 = scalar_select 0, %s24, %s22
  $region1: #{mygnn_forward.1} parent=0
    #allocation4 [shape = 'u8[4096]{0}', space=vmem, size = 0x1000, scoped, tag = 'output window, operand 0, single buffered']
    #allocation5 [shape = 's32[1]{0}', space=sflag, size = 0x4, scoped, tag = 'scoped memory for mygnn_forward.1']
    %26 = vsyncpa [#allocation5], 0
    // Predicated region
    $region2: #{mygnn_forward.1} parent=1 // pred_check
      _
    $region3: #{mygnn_forward.1} parent=1 // pred_check_branch
      %28 = sbr.rel (0) target = $region5
    $region4: #{mygnn_forward.1} parent=1 // pred_region
      _
    $region5: #{mygnn_forward.1} parent=1 // pred_fallthru
      _
    // Predicated region
    $region6: #{mygnn_forward.1} parent=1 // pred_check
      _
    $region7: #{mygnn_forward.1} parent=1 // pred_check_branch
      %30 = sbr.rel (0) target = $region9
    $region8: #{mygnn_forward.1} parent=1 // pred_region
      _
    $region9: #{mygnn_forward.1} parent=1 // pred_fallthru
      _
    // Predicated region
    $region10: #{mygnn_forward.1} parent=1 // pred_check
      _
    $region11: #{mygnn_forward.1} parent=1 // pred_check_branch
      %32 = sbr.rel (0) target = $region13
    $region12: #{mygnn_forward.1} parent=1 // pred_region
      _
    $region13: #{mygnn_forward.1} parent=1 // pred_fallthru
      _
    // Predicated region
    $region14: #{mygnn_forward.1} parent=1 // pred_check
      _
    $region15: #{mygnn_forward.1} parent=1 // pred_check_branch
      %34 = sbr.rel (0) target = $region17
    $region16: #{mygnn_forward.1} parent=1 // pred_region
      _
    $region17: #{mygnn_forward.1} parent=1 // pred_fallthru
      _
    // Predicated region
    $region18: #{mygnn_forward.1} parent=1 // pred_check
      _
    $region19: #{mygnn_forward.1} parent=1 // pred_check_branch
      %36 = sbr.rel (0) target = $region21
    $region20: #{mygnn_forward.1} parent=1 // pred_region
      _
    $region21: #{mygnn_forward.1} parent=1 // pred_fallthru
      _
    // Predicated region
    $region22: #{mygnn_forward.1} parent=1 // pred_check
      _
    $region23: #{mygnn_forward.1} parent=1 // pred_check_branch
      %38 = sbr.rel (0) target = $region25
    $region24: #{mygnn_forward.1} parent=1 // pred_region
      _
    $region25: #{mygnn_forward.1} parent=1 // pred_fallthru
      _
    // Predicated region
    $region26: #{mygnn_forward.1} parent=1 // pred_check
      _
    $region27: #{mygnn_forward.1} parent=1 // pred_check_branch
      %40 = sbr.rel (0) target = $region29
    $region28: #{mygnn_forward.1} parent=1 // pred_region
      _
    $region29: #{mygnn_forward.1} parent=1 // pred_fallthru
      _
    // Predicated region
    $region30: #{mygnn_forward.1} parent=1 // pred_check
      _
    $region31: #{mygnn_forward.1} parent=1 // pred_check_branch
      %42 = sbr.rel (0) target = $region33
    $region32: #{mygnn_forward.1} parent=1 // pred_region
      _
    $region33: #{mygnn_forward.1} parent=1 // pred_fallthru
      _
    // Predicated region
    $region34: #{mygnn_forward.1} parent=1 // pred_check
      _
    $region35: #{mygnn_forward.1} parent=1 // pred_check_branch
      %44 = sbr.rel (0) target = $region37
    $region36: #{mygnn_forward.1} parent=1 // pred_region
      _
    $region37: #{mygnn_forward.1} parent=1 // pred_fallthru
      _
    // Predicated region
    $region38: #{mygnn_forward.1} parent=1 // pred_check
      _
    $region39: #{mygnn_forward.1} parent=1 // pred_check_branch
      %46 = sbr.rel (0) target = $region41
    $region40: #{mygnn_forward.1} parent=1 // pred_region
      _
    $region41: #{mygnn_forward.1} parent=1 // pred_fallthru
      _
    // Predicated region
    $region42: #{mygnn_forward.1} parent=1 // pred_check
      _
    $region43: #{mygnn_forward.1} parent=1 // pred_check_branch
      %48 = sbr.rel (0) target = $region45
    $region44: #{mygnn_forward.1} parent=1 // pred_region
      _
    $region45: #{mygnn_forward.1} parent=1 // pred_fallthru
      _
    // Predicated region
    $region46: #{mygnn_forward.1} parent=1 // pred_check
      _
    $region47: #{mygnn_forward.1} parent=1 // pred_check_branch
      %50 = sbr.rel (0) target = $region49
    $region48: #{mygnn_forward.1} parent=1 // pred_region
      _
    $region49: #{mygnn_forward.1} parent=1 // pred_fallthru
      _
    // Predicated region
    $region50: #{mygnn_forward.1} parent=1 // pred_check
      _
    $region51: #{mygnn_forward.1} parent=1 // pred_check_branch
      %52 = sbr.rel (0) target = $region53
    $region52: #{mygnn_forward.1} parent=1 // pred_region
      _
    $region53: #{mygnn_forward.1} parent=1 // pred_fallthru
      _
    // Predicated region
    $region54: #{mygnn_forward.1} parent=1 // pred_check
      _
    $region55: #{mygnn_forward.1} parent=1 // pred_check_branch
      %54 = sbr.rel (0) target = $region57
    $region56: #{mygnn_forward.1} parent=1 // pred_region
      _
    $region57: #{mygnn_forward.1} parent=1 // pred_fallthru
      _
    // Predicated region
    $region58: #{mygnn_forward.1} parent=1 // pred_check
      _
    $region59: #{mygnn_forward.1} parent=1 // pred_check_branch
      %56 = sbr.rel (0) target = $region61
    $region60: #{mygnn_forward.1} parent=1 // pred_region
      _
    $region61: #{mygnn_forward.1} parent=1 // pred_fallthru
      _
    // Predicated region
    $region62: #{mygnn_forward.1} parent=1 // pred_check
      _
    $region63: #{mygnn_forward.1} parent=1 // pred_check_branch
      %58 = sbr.rel (0) target = $region65
    $region64: #{mygnn_forward.1} parent=1 // pred_region
      _
    $region65: #{mygnn_forward.1} parent=1 // pred_fallthru
      _
    // Predicated region
    $region66: #{mygnn_forward.1} parent=1 // pred_check
      _
    $region67: #{mygnn_forward.1} parent=1 // pred_check_branch
      %60 = sbr.rel (0) target = $region69
    $region68: #{mygnn_forward.1} parent=1 // pred_region
      _
    $region69: #{mygnn_forward.1} parent=1 // pred_fallthru
      _
    // Predicated region
    $region70: #{mygnn_forward.1} parent=1 // pred_check
      _
    $region71: #{mygnn_forward.1} parent=1 // pred_check_branch
      %62 = sbr.rel (0) target = $region73
    $region72: #{mygnn_forward.1} parent=1 // pred_region
      _
    $region73: #{mygnn_forward.1} parent=1 // pred_fallthru
      _
    // Predicated region
    $region74: #{mygnn_forward.1} parent=1 // pred_check
      _
    $region75: #{mygnn_forward.1} parent=1 // pred_check_branch
      %64 = sbr.rel (0) target = $region77
    $region76: #{mygnn_forward.1} parent=1 // pred_region
      _
    $region77: #{mygnn_forward.1} parent=1 // pred_fallthru
      _
    // Predicated region
    $region78: #{mygnn_forward.1} parent=1 // pred_check
      _
    $region79: #{mygnn_forward.1} parent=1 // pred_check_branch
      %66 = sbr.rel (0) target = $region81
    $region80: #{mygnn_forward.1} parent=1 // pred_region
      _
    $region81: #{mygnn_forward.1} parent=1 // pred_fallthru
      _
    // Predicated region
    $region82: #{mygnn_forward.1} parent=1 // pred_check
      _
    $region83: #{mygnn_forward.1} parent=1 // pred_check_branch
      %68 = sbr.rel (0) target = $region85
    $region84: #{mygnn_forward.1} parent=1 // pred_region
      _
    $region85: #{mygnn_forward.1} parent=1 // pred_fallthru
      _
    %v69 = vld [vmem:[%s0] sm:$0xff]
    %v70 = vld [vmem:[%s0 + $0x8] sm:$0xff]
    %v71 = vld [vmem:[%s0 + $0x10] sm:$0xff]
    %v72 = vld [vmem:[%s1] sm:$0xff]
    %v73 = vld [vmem:[%s1 + $0x8] sm:$0xff]
    %v74 = vld [vmem:[%s1 + $0x10] sm:$0xff]
    %v75 = vld [vmem:[%s2] sm:$0xff]
    %v76 = vld [vmem:[%s2 + $0x8] sm:$0xff]
    %v77 = vld [vmem:[%s2 + $0x10] sm:$0xff]
    %vm78 = vcmask 195584
    %v80 = vsel %vm78, %v72, 0
    %v83 = vsel %vm78, %v73, 0
    %v86 = vsel %vm78, %v74, 0
    %88 = vmatprep.subr.mxu0 0.0
    %89 = vmatpush1.msra.mxu0 %v69
    %90 = vmatprep.subr.mxu0 0.0
    %91 = vmatpush1.msra.mxu0 %v70
    %92 = vmatprep.subr.mxu0 0.0
    %93 = vmatpush1.msra.mxu0 %v71
    %94 = vmatprep.subr.mxu0 0.0
    %95 = vmatpush1.msra.mxu0 0.0
    %96 = vmatprep.subr.mxu0 0.0
    %97 = vmatpush1.msra.mxu0 0.0
    %98 = vmatprep.subr.mxu0 0.0
    %99 = vmatpush1.msra.mxu0 0.0
    %100 = vmatprep.subr.mxu0 0.0
    %101 = vmatpush1.msra.mxu0 0.0
    %102 = vmatprep.subr.mxu0 0.0
    %103 = vmatpush1.msra.mxu0 0.0
    %104 = vmatprep.subr.mxu0 0.0
    %105 = vmatpush1.msra.mxu0 0.0
    %106 = vmatprep.subr.mxu0 0.0
    %107 = vmatpush1.msra.mxu0 0.0
    %108 = vmatprep.subr.mxu0 0.0
    %109 = vmatpush1.msra.mxu0 0.0
    %110 = vmatprep.subr.mxu0 0.0
    %111 = vmatpush1.msra.mxu0 0.0
    %112 = vmatprep.subr.mxu0 0.0
    %113 = vmatpush1.msra.mxu0 0.0
    %114 = vmatprep.subr.mxu0 0.0
    %115 = vmatpush1.msra.mxu0 0.0
    %116 = vmatprep.subr.mxu0 0.0
    %117 = vmatpush1.msra.mxu0 0.0
    %118 = vmatprep.subr.mxu0 0.0
    %119 = vmatpush1.msra.mxu0 0.0
    %120 = vmatprep.subr.mxu0 0.0
    %121 = vmatpush1.msra.mxu0 0.0
    %122 = vmatprep.subr.mxu0 0.0
    %123 = vmatpush1.msra.mxu0 0.0
    %124 = vmatprep.subr.mxu0 0.0
    %125 = vmatpush1.msra.mxu0 0.0
    %126 = vmatprep.subr.mxu0 0.0
    %127 = vmatpush1.msra.mxu0 0.0
    %128 = vmatprep.subr.mxu0 0.0
    %129 = vmatpush1.msra.mxu0 0.0
    %130 = vmatprep.subr.mxu0 0.0
    %131 = vmatpush1.msra.mxu0 0.0
    %132 = vmatprep.subr.mxu0 0.0
    %133 = vmatpush1.msra.mxu0 0.0
    %134 = vmatprep.subr.mxu0 0.0
    %135 = vmatpush1.msra.mxu0 0.0
    %136 = vmatprep.subr.mxu0 0.0
    %137 = vmatpush1.msra.mxu0 0.0
    %138 = vmatprep.subr.mxu0 0.0
    %139 = vmatpush1.msra.mxu0 0.0
    %140 = vmatprep.subr.mxu0 0.0
    %141 = vmatpush1.msra.mxu0 0.0
    %142 = vmatprep.subr.mxu0 0.0
    %143 = vmatpush1.msra.mxu0 0.0
    %144 = vmatprep.subr.mxu0 0.0
    %145 = vmatpush1.msra.mxu0 0.0
    %146 = vmatprep.subr.mxu0 0.0
    %147 = vmatpush1.msra.mxu0 0.0
    %148 = vmatprep.subr.mxu0 0.0
    %149 = vmatpush1.msra.mxu0 0.0
    %150 = vmatprep.subr.mxu0 0.0
    %151 = vmatpush1.msra.mxu0 0.0
    %152 = vmatprep.mubr.f32.mxu0 0.0
    %153 = vmatmul.mubr.f32.gmra.mrb[0].mxu0 %v80
    %v154 = vpop.f32.mrb[0].mxu0
    %v155 = vadd.f32 0.0, %v154
    %v156 = vpop.f32.mrb[0].mxu0
    %157 = vmatprep.mubr.f32.mxu0 0.0
    %158 = vmatmul.mubr.f32.gmra.mrb[0].mxu0 %v83
    %v159 = vpop.f32.mrb[0].mxu0
    %v160 = vadd.f32 0.0, %v159
    %v161 = vpop.f32.mrb[0].mxu0
    %162 = vmatprep.mubr.f32.mxu0 0.0
    %163 = vmatmul.mubr.f32.gmra.mrb[0].mxu0 %v86
    %v164 = vpop.f32.mrb[0].mxu0
    %v165 = vadd.f32 0.0, %v164
    %v166 = vpop.f32.mrb[0].mxu0
    %167 = vdwg.mxu0
    %171 = vrot.lane.b32.xlu0 %v155, 16
    %v172 = vpop.permute.xlu0 %171
    %173 = vrot.lane.b32.xlu0 %v160, 16
    %v174 = vpop.permute.xlu0 %173
    %175 = vrot.lane.b32.xlu0 %v165, 16
    %v176 = vpop.permute.xlu0 %175
    %vm180 = vcmask 130048
    %v181 = vsel %vm180, %v69, %v172
    %v182 = vsel %vm180, %v70, %v174
    %v183 = vsel %vm180, %v71, %v176
    %v184 = vld [vmem:[%s3] sm:$0xff]
    %v185 = vld [vmem:[%s3 + $0x8] sm:$0xff]
    %v186 = vld [vmem:[%s3 + $0x10] sm:$0xff]
    %v187 = vld [vmem:[%s3 + $0x18] sm:$0xff]
    %v188 = vld [vmem:[%s4] sm:$0x1]
    %v190 = vlaneseq
    %v191 = vshrl.u32 %v190, 7
    %v192 = vsub.s32 0, %v191
    %v193 = vrot.slane %v188, %v192
    %vm195 = vcmask 261120
    %v197 = vsel %vm195, %v181, 0
    %v200 = vsel %vm195, %v182, 0
    %v203 = vsel %vm195, %v183, 0
    %205 = vmatprep.subr.mxu0 0.0
    %206 = vmatpush1.msra.mxu0 %v184
    %207 = vmatprep.subr.mxu0 0.0
    %208 = vmatpush1.msra.mxu0 %v185
    %209 = vmatprep.subr.mxu0 0.0
    %210 = vmatpush1.msra.mxu0 %v186
    %211 = vmatprep.subr.mxu0 0.0
    %212 = vmatpush1.msra.mxu0 %v187
    %213 = vmatprep.subr.mxu0 0.0
    %214 = vmatpush1.msra.mxu0 0.0
    %215 = vmatprep.subr.mxu0 0.0
    %216 = vmatpush1.msra.mxu0 0.0
    %217 = vmatprep.subr.mxu0 0.0
    %218 = vmatpush1.msra.mxu0 0.0
    %219 = vmatprep.subr.mxu0 0.0
    %220 = vmatpush1.msra.mxu0 0.0
    %221 = vmatprep.subr.mxu0 0.0
    %222 = vmatpush1.msra.mxu0 0.0
    %223 = vmatprep.subr.mxu0 0.0
    %224 = vmatpush1.msra.mxu0 0.0
    %225 = vmatprep.subr.mxu0 0.0
    %226 = vmatpush1.msra.mxu0 0.0
    %227 = vmatprep.subr.mxu0 0.0
    %228 = vmatpush1.msra.mxu0 0.0
    %229 = vmatprep.subr.mxu0 0.0
    %230 = vmatpush1.msra.mxu0 0.0
    %231 = vmatprep.subr.mxu0 0.0
    %232 = vmatpush1.msra.mxu0 0.0
    %233 = vmatprep.subr.mxu0 0.0
    %234 = vmatpush1.msra.mxu0 0.0
    %235 = vmatprep.subr.mxu0 0.0
    %236 = vmatpush1.msra.mxu0 0.0
    %237 = vmatprep.subr.mxu0 0.0
    %238 = vmatpush1.msra.mxu0 0.0
    %239 = vmatprep.subr.mxu0 0.0
    %240 = vmatpush1.msra.mxu0 0.0
    %241 = vmatprep.subr.mxu0 0.0
    %242 = vmatpush1.msra.mxu0 0.0
    %243 = vmatprep.subr.mxu0 0.0
    %244 = vmatpush1.msra.mxu0 0.0
    %245 = vmatprep.subr.mxu0 0.0
    %246 = vmatpush1.msra.mxu0 0.0
    %247 = vmatprep.subr.mxu0 0.0
    %248 = vmatpush1.msra.mxu0 0.0
    %249 = vmatprep.subr.mxu0 0.0
    %250 = vmatpush1.msra.mxu0 0.0
    %251 = vmatprep.subr.mxu0 0.0
    %252 = vmatpush1.msra.mxu0 0.0
    %253 = vmatprep.subr.mxu0 0.0
    %254 = vmatpush1.msra.mxu0 0.0
    %255 = vmatprep.subr.mxu0 0.0
    %256 = vmatpush1.msra.mxu0 0.0
    %257 = vmatprep.subr.mxu0 0.0
    %258 = vmatpush1.msra.mxu0 0.0
    %259 = vmatprep.subr.mxu0 0.0
    %260 = vmatpush1.msra.mxu0 0.0
    %261 = vmatprep.subr.mxu0 0.0
    %262 = vmatpush1.msra.mxu0 0.0
    %263 = vmatprep.subr.mxu0 0.0
    %264 = vmatpush1.msra.mxu0 0.0
    %265 = vmatprep.subr.mxu0 0.0
    %266 = vmatpush1.msra.mxu0 0.0
    %267 = vmatprep.subr.mxu0 0.0
    %268 = vmatpush1.msra.mxu0 0.0
    %269 = vmatprep.mubr.f32.mxu0 0.0
    %270 = vmatmul.mubr.f32.gmra.mrb[0].mxu0 %v197
    %v271 = vpop.f32.mrb[0].mxu0
    %v272 = vadd.f32 %v193, %v271
    %v273 = vpop.f32.mrb[0].mxu0
    %274 = vmatprep.mubr.f32.mxu0 0.0
    %275 = vmatmul.mubr.f32.gmra.mrb[0].mxu0 %v200
    %v276 = vpop.f32.mrb[0].mxu0
    %v277 = vadd.f32 %v193, %v276
    %v278 = vpop.f32.mrb[0].mxu0
    %279 = vmatprep.mubr.f32.mxu0 0.0
    %280 = vmatmul.mubr.f32.gmra.mrb[0].mxu0 %v203
    %v281 = vpop.f32.mrb[0].mxu0
    %v282 = vadd.f32 %v193, %v281
    %v283 = vpop.f32.mrb[0].mxu0
    %284 = vdwg.mxu0
    %v285 = vmax.f32 %v272, 0.0
    %v286 = vmax.f32 %v277, 0.0
    %v287 = vmax.f32 %v282, 0.0
    %288 = vmatprep.subr.mxu0 0.0
    %289 = vmatpush1.msra.mxu0 %v285
    %290 = vmatprep.subr.mxu0 0.0
    %291 = vmatpush1.msra.mxu0 %v286
    %292 = vmatprep.subr.mxu0 0.0
    %293 = vmatpush1.msra.mxu0 %v287
    %294 = vmatprep.subr.mxu0 0.0
    %295 = vmatpush1.msra.mxu0 0.0
    %296 = vmatprep.subr.mxu0 0.0
    %297 = vmatpush1.msra.mxu0 0.0
    %298 = vmatprep.subr.mxu0 0.0
    %299 = vmatpush1.msra.mxu0 0.0
    %300 = vmatprep.subr.mxu0 0.0
    %301 = vmatpush1.msra.mxu0 0.0
    %302 = vmatprep.subr.mxu0 0.0
    %303 = vmatpush1.msra.mxu0 0.0
    %304 = vmatprep.subr.mxu0 0.0
    %305 = vmatpush1.msra.mxu0 0.0
    %306 = vmatprep.subr.mxu0 0.0
    %307 = vmatpush1.msra.mxu0 0.0
    %308 = vmatprep.subr.mxu0 0.0
    %309 = vmatpush1.msra.mxu0 0.0
    %310 = vmatprep.subr.mxu0 0.0
    %311 = vmatpush1.msra.mxu0 0.0
    %312 = vmatprep.subr.mxu0 0.0
    %313 = vmatpush1.msra.mxu0 0.0
    %314 = vmatprep.subr.mxu0 0.0
    %315 = vmatpush1.msra.mxu0 0.0
    %316 = vmatprep.subr.mxu0 0.0
    %317 = vmatpush1.msra.mxu0 0.0
    %318 = vmatprep.subr.mxu0 0.0
    %319 = vmatpush1.msra.mxu0 0.0
    %320 = vmatprep.subr.mxu0 0.0
    %321 = vmatpush1.msra.mxu0 0.0
    %322 = vmatprep.subr.mxu0 0.0
    %323 = vmatpush1.msra.mxu0 0.0
    %324 = vmatprep.subr.mxu0 0.0
    %325 = vmatpush1.msra.mxu0 0.0
    %326 = vmatprep.subr.mxu0 0.0
    %327 = vmatpush1.msra.mxu0 0.0
    %328 = vmatprep.subr.mxu0 0.0
    %329 = vmatpush1.msra.mxu0 0.0
    %330 = vmatprep.subr.mxu0 0.0
    %331 = vmatpush1.msra.mxu0 0.0
    %332 = vmatprep.subr.mxu0 0.0
    %333 = vmatpush1.msra.mxu0 0.0
    %334 = vmatprep.subr.mxu0 0.0
    %335 = vmatpush1.msra.mxu0 0.0
    %336 = vmatprep.subr.mxu0 0.0
    %337 = vmatpush1.msra.mxu0 0.0
    %338 = vmatprep.subr.mxu0 0.0
    %339 = vmatpush1.msra.mxu0 0.0
    %340 = vmatprep.subr.mxu0 0.0
    %341 = vmatpush1.msra.mxu0 0.0
    %342 = vmatprep.subr.mxu0 0.0
    %343 = vmatpush1.msra.mxu0 0.0
    %344 = vmatprep.subr.mxu0 0.0
    %345 = vmatpush1.msra.mxu0 0.0
    %346 = vmatprep.subr.mxu0 0.0
    %347 = vmatpush1.msra.mxu0 0.0
    %348 = vmatprep.subr.mxu0 0.0
    %349 = vmatpush1.msra.mxu0 0.0
    %350 = vmatprep.subr.mxu0 0.0
    %351 = vmatpush1.msra.mxu0 0.0
    %352 = vmatprep.mubr.f32.mxu0 0.0
    %353 = vmatmul.mubr.f32.gmra.mrb[0].mxu0 %v80
    %v354 = vpop.f32.mrb[0].mxu0
    %v355 = vadd.f32 0.0, %v354
    %v356 = vpop.f32.mrb[0].mxu0
    %357 = vmatprep.mubr.f32.mxu0 0.0
    %358 = vmatmul.mubr.f32.gmra.mrb[0].mxu0 %v83
    %v359 = vpop.f32.mrb[0].mxu0
    %v360 = vadd.f32 0.0, %v359
    %v361 = vpop.f32.mrb[0].mxu0
    %362 = vmatprep.mubr.f32.mxu0 0.0
    %363 = vmatmul.mubr.f32.gmra.mrb[0].mxu0 %v86
    %v364 = vpop.f32.mrb[0].mxu0
    %v365 = vadd.f32 0.0, %v364
    %v366 = vpop.f32.mrb[0].mxu0
    %367 = vdwg.mxu0
    %371 = vrot.lane.b32.xlu0 %v355, 8
    %v372 = vpop.permute.xlu0 %371
    %373 = vrot.lane.b32.xlu0 %v360, 8
    %v374 = vpop.permute.xlu0 %373
    %375 = vrot.lane.b32.xlu0 %v365, 8
    %v376 = vpop.permute.xlu0 %375
    %vm380 = vcmask 64512
    %v381 = vsel %vm380, %v285, %v372
    %v382 = vsel %vm380, %v286, %v374
    %v383 = vsel %vm380, %v287, %v376
    %v384 = vld [vmem:[%s5] sm:$0xff]
    %v385 = vld [vmem:[%s5 + $0x8] sm:$0xff]
    %v386 = vld [vmem:[%s6] sm:$0x1]
    %v388 = vlaneseq
    %v389 = vshrl.u32 %v388, 7
    %v390 = vsub.s32 0, %v389
    %v391 = vrot.slane %v386, %v390
    %v394 = vsel %vm180, %v381, 0
    %v397 = vsel %vm180, %v382, 0
    %v400 = vsel %vm180, %v383, 0
    %402 = vmatprep.subr.mxu0 0.0
    %403 = vmatpush1.msra.mxu0 %v384
    %404 = vmatprep.subr.mxu0 0.0
    %405 = vmatpush1.msra.mxu0 %v385
    %406 = vmatprep.subr.mxu0 0.0
    %407 = vmatpush1.msra.mxu0 0.0
    %408 = vmatprep.subr.mxu0 0.0
    %409 = vmatpush1.msra.mxu0 0.0
    %410 = vmatprep.subr.mxu0 0.0
    %411 = vmatpush1.msra.mxu0 0.0
    %412 = vmatprep.subr.mxu0 0.0
    %413 = vmatpush1.msra.mxu0 0.0
    %414 = vmatprep.subr.mxu0 0.0
    %415 = vmatpush1.msra.mxu0 0.0
    %416 = vmatprep.subr.mxu0 0.0
    %417 = vmatpush1.msra.mxu0 0.0
    %418 = vmatprep.subr.mxu0 0.0
    %419 = vmatpush1.msra.mxu0 0.0
    %420 = vmatprep.subr.mxu0 0.0
    %421 = vmatpush1.msra.mxu0 0.0
    %422 = vmatprep.subr.mxu0 0.0
    %423 = vmatpush1.msra.mxu0 0.0
    %424 = vmatprep.subr.mxu0 0.0
    %425 = vmatpush1.msra.mxu0 0.0
    %426 = vmatprep.subr.mxu0 0.0
    %427 = vmatpush1.msra.mxu0 0.0
    %428 = vmatprep.subr.mxu0 0.0
    %429 = vmatpush1.msra.mxu0 0.0
    %430 = vmatprep.subr.mxu0 0.0
    %431 = vmatpush1.msra.mxu0 0.0
    %432 = vmatprep.subr.mxu0 0.0
    %433 = vmatpush1.msra.mxu0 0.0
    %434 = vmatprep.subr.mxu0 0.0
    %435 = vmatpush1.msra.mxu0 0.0
    %436 = vmatprep.subr.mxu0 0.0
    %437 = vmatpush1.msra.mxu0 0.0
    %438 = vmatprep.subr.mxu0 0.0
    %439 = vmatpush1.msra.mxu0 0.0
    %440 = vmatprep.subr.mxu0 0.0
    %441 = vmatpush1.msra.mxu0 0.0
    %442 = vmatprep.subr.mxu0 0.0
    %443 = vmatpush1.msra.mxu0 0.0
    %444 = vmatprep.subr.mxu0 0.0
    %445 = vmatpush1.msra.mxu0 0.0
    %446 = vmatprep.subr.mxu0 0.0
    %447 = vmatpush1.msra.mxu0 0.0
    %448 = vmatprep.subr.mxu0 0.0
    %449 = vmatpush1.msra.mxu0 0.0
    %450 = vmatprep.subr.mxu0 0.0
    %451 = vmatpush1.msra.mxu0 0.0
    %452 = vmatprep.subr.mxu0 0.0
    %453 = vmatpush1.msra.mxu0 0.0
    %454 = vmatprep.subr.mxu0 0.0
    %455 = vmatpush1.msra.mxu0 0.0
    %456 = vmatprep.subr.mxu0 0.0
    %457 = vmatpush1.msra.mxu0 0.0
    %458 = vmatprep.subr.mxu0 0.0
    %459 = vmatpush1.msra.mxu0 0.0
    %460 = vmatprep.subr.mxu0 0.0
    %461 = vmatpush1.msra.mxu0 0.0
    %462 = vmatprep.subr.mxu0 0.0
    %463 = vmatpush1.msra.mxu0 0.0
    %464 = vmatprep.subr.mxu0 0.0
    %465 = vmatpush1.msra.mxu0 0.0
    %466 = vmatprep.mubr.f32.mxu0 0.0
    %467 = vmatmul.mubr.f32.gmra.mrb[0].mxu0 %v394
    %v468 = vpop.f32.mrb[0].mxu0
    %v469 = vadd.f32 %v391, %v468
    %v470 = vpop.f32.mrb[0].mxu0
    %471 = vmatprep.mubr.f32.mxu0 0.0
    %472 = vmatmul.mubr.f32.gmra.mrb[0].mxu0 %v397
    %v473 = vpop.f32.mrb[0].mxu0
    %v474 = vadd.f32 %v391, %v473
    %v475 = vpop.f32.mrb[0].mxu0
    %476 = vmatprep.mubr.f32.mxu0 0.0
    %477 = vmatmul.mubr.f32.gmra.mrb[0].mxu0 %v400
    %v478 = vpop.f32.mrb[0].mxu0
    %v479 = vadd.f32 %v391, %v478
    %v480 = vpop.f32.mrb[0].mxu0
    %481 = vdwg.mxu0
    %v482 = vld [vmem:[%s7] sm:$0xff]
    %v484 = vsel %vm380, %v469, 0
    %v487 = vsel %vm380, %v474, 0
    %v490 = vsel %vm380, %v479, 0
    %492 = vmatprep.subr.mxu0 0.0
    %493 = vmatpush1.msra.mxu0 %v482
    %494 = vmatprep.subr.mxu0 0.0
    %495 = vmatpush1.msra.mxu0 0.0
    %496 = vmatprep.subr.mxu0 0.0
    %497 = vmatpush1.msra.mxu0 0.0
    %498 = vmatprep.subr.mxu0 0.0
    %499 = vmatpush1.msra.mxu0 0.0
    %500 = vmatprep.subr.mxu0 0.0
    %501 = vmatpush1.msra.mxu0 0.0
    %502 = vmatprep.subr.mxu0 0.0
    %503 = vmatpush1.msra.mxu0 0.0
    %504 = vmatprep.subr.mxu0 0.0
    %505 = vmatpush1.msra.mxu0 0.0
    %506 = vmatprep.subr.mxu0 0.0
    %507 = vmatpush1.msra.mxu0 0.0
    %508 = vmatprep.subr.mxu0 0.0
    %509 = vmatpush1.msra.mxu0 0.0
    %510 = vmatprep.subr.mxu0 0.0
    %511 = vmatpush1.msra.mxu0 0.0
    %512 = vmatprep.subr.mxu0 0.0
    %513 = vmatpush1.msra.mxu0 0.0
    %514 = vmatprep.subr.mxu0 0.0
    %515 = vmatpush1.msra.mxu0 0.0
    %516 = vmatprep.subr.mxu0 0.0
    %517 = vmatpush1.msra.mxu0 0.0
    %518 = vmatprep.subr.mxu0 0.0
    %519 = vmatpush1.msra.mxu0 0.0
    %520 = vmatprep.subr.mxu0 0.0
    %521 = vmatpush1.msra.mxu0 0.0
    %522 = vmatprep.subr.mxu0 0.0
    %523 = vmatpush1.msra.mxu0 0.0
    %524 = vmatprep.subr.mxu0 0.0
    %525 = vmatpush1.msra.mxu0 0.0
    %526 = vmatprep.subr.mxu0 0.0
    %527 = vmatpush1.msra.mxu0 0.0
    %528 = vmatprep.subr.mxu0 0.0
    %529 = vmatpush1.msra.mxu0 0.0
    %530 = vmatprep.subr.mxu0 0.0
    %531 = vmatpush1.msra.mxu0 0.0
    %532 = vmatprep.subr.mxu0 0.0
    %533 = vmatpush1.msra.mxu0 0.0
    %534 = vmatprep.subr.mxu0 0.0
    %535 = vmatpush1.msra.mxu0 0.0
    %536 = vmatprep.subr.mxu0 0.0
    %537 = vmatpush1.msra.mxu0 0.0
    %538 = vmatprep.subr.mxu0 0.0
    %539 = vmatpush1.msra.mxu0 0.0
    %540 = vmatprep.subr.mxu0 0.0
    %541 = vmatpush1.msra.mxu0 0.0
    %542 = vmatprep.subr.mxu0 0.0
    %543 = vmatpush1.msra.mxu0 0.0
    %544 = vmatprep.subr.mxu0 0.0
    %545 = vmatpush1.msra.mxu0 0.0
    %546 = vmatprep.subr.mxu0 0.0
    %547 = vmatpush1.msra.mxu0 0.0
    %548 = vmatprep.subr.mxu0 0.0
    %549 = vmatpush1.msra.mxu0 0.0
    %550 = vmatprep.subr.mxu0 0.0
    %551 = vmatpush1.msra.mxu0 0.0
    %552 = vmatprep.subr.mxu0 0.0
    %553 = vmatpush1.msra.mxu0 0.0
    %554 = vmatprep.subr.mxu0 0.0
    %555 = vmatpush1.msra.mxu0 0.0
    %556 = vmatprep.mubr.f32.mxu0 0.0
    %557 = vmatmul.mubr.f32.gmra.mrb[0].mxu0 %v484
    %v558 = vpop.f32.mrb[0].mxu0
    %v559 = vadd.f32 0.0, %v558
    %v560 = vpop.f32.mrb[0].mxu0
    %561 = vmatprep.mubr.f32.mxu0 0.0
    %562 = vmatmul.mubr.f32.gmra.mrb[0].mxu0 %v487
    %v563 = vpop.f32.mrb[0].mxu0
    %v564 = vadd.f32 0.0, %v563
    %v565 = vpop.f32.mrb[0].mxu0
    %566 = vmatprep.mubr.f32.mxu0 0.0
    %567 = vmatmul.mubr.f32.gmra.mrb[0].mxu0 %v490
    %v568 = vpop.f32.mrb[0].mxu0
    %v569 = vadd.f32 0.0, %v568
    %v570 = vpop.f32.mrb[0].mxu0
    %571 = vdwg.mxu0
    %v572 = vld [vmem:[%s8] sm:$0x1]
    %v574 = vlaneseq
    %v575 = vshrl.u32 %v574, 7
    %v576 = vsub.s32 0, %v575
    %v577 = vrot.slane %v572, %v576
    %v579 = vmul.f32 %v559, %v577
    %v580 = vmul.f32 %v564, %v577
    %v581 = vmul.f32 %v569, %v577
    %v582 = vsel %vm380, %v579, 0.0
    %583 = vadd.xlane.f32.xlu0 %v582
    %v584 = vpop.xlane.xlu0 %583
    %v585 = vsel %vm380, %v580, 0.0
    %586 = vadd.xlane.f32.xlu0 %v585
    %v587 = vpop.xlane.xlu0 %586
    %v588 = vsel %vm380, %v581, 0.0
    %589 = vadd.xlane.f32.xlu0 %v588
    %v590 = vpop.xlane.xlu0 %589
    %v591 = vld [vmem:[%s9] sm:$0x1]
    %v593 = vlaneseq
    %v594 = vshrl.u32 %v593, 7
    %v595 = vsub.s32 0, %v594
    %v596 = vrot.slane %v591, %v595
    %v598 = vmul.f32 %v559, %v596
    %v599 = vmul.f32 %v564, %v596
    %v600 = vmul.f32 %v569, %v596
    %v601 = vsel %vm380, %v598, 0.0
    %602 = vadd.xlane.f32.xlu0 %v601
    %v603 = vpop.xlane.xlu0 %602
    %v604 = vsel %vm380, %v599, 0.0
    %605 = vadd.xlane.f32.xlu0 %v604
    %v606 = vpop.xlane.xlu0 %605
    %v607 = vsel %vm380, %v600, 0.0
    %608 = vadd.xlane.f32.xlu0 %v607
    %v609 = vpop.xlane.xlu0 %608
    %610 = vxpose.xlu0.b32.start [1/16] %v584, 128
    %611 = vxpose.xlu0.b32.cont [2/16] %v587, 128
    %612 = vxpose.xlu0.b32.cont [3/16] %v590, 128
    %613 = vxpose.xlu0.b32.cont [4/16] 0.0, 128
    %614 = vxpose.xlu0.b32.cont [5/16] 0.0, 128
    %615 = vxpose.xlu0.b32.cont [6/16] 0.0, 128
    %616 = vxpose.xlu0.b32.cont [7/16] 0.0, 128
    %617 = vxpose.xlu0.b32.cont [8/16] 0.0, 128
    %618 = vxpose.xlu0.b32.cont [9/16] 0.0, 128
    %619 = vxpose.xlu0.b32.cont [10/16] 0.0, 128
    %620 = vxpose.xlu0.b32.cont [11/16] 0.0, 128
    %621 = vxpose.xlu0.b32.cont [12/16] 0.0, 128
    %622 = vxpose.xlu0.b32.cont [13/16] 0.0, 128
    %623 = vxpose.xlu0.b32.cont [14/16] 0.0, 128
    %624 = vxpose.xlu0.b32.cont [15/16] 0.0, 128
    %625 = vxpose.xlu0.b32.end [16/16] 0.0, 128
    %v626 = vpop.trf.xlu0
    %v627 = vpop.trf.xlu0
    %v628 = vpop.trf.xlu0
    %v629 = vpop.trf.xlu0
    %v630 = vpop.trf.xlu0
    %v631 = vpop.trf.xlu0
    %v632 = vpop.trf.xlu0
    %v633 = vpop.trf.xlu0
    %v634 = vpop.trf.xlu0
    %v635 = vpop.trf.xlu0
    %v636 = vpop.trf.xlu0
    %v637 = vpop.trf.xlu0
    %v638 = vpop.trf.xlu0
    %v639 = vpop.trf.xlu0
    %v640 = vpop.trf.xlu0
    %v641 = vpop.trf.xlu0
    %v642 = vadd.f32 %v603, %v626
    %v643 = vadd.f32 %v606, %v627
    %v644 = vadd.f32 %v609, %v628
    %vm645 = vcmp.gt.f32.partialorder %v642, 0.0
    %vm646 = vcmp.gt.f32.partialorder %v643, 0.0
    %vm647 = vcmp.gt.f32.partialorder %v644, 0.0
    %v648 = vmul.f32 %v642, 0.2
    %v649 = vmul.f32 %v643, 0.2
    %v650 = vmul.f32 %v644, 0.2
    %v651 = vsel %vm645, %v642, %v648
    %v652 = vsel %vm646, %v643, %v649
    %v653 = vsel %vm647, %v644, %v650
    %vm654 = vcmp.gt.f32.partialorder %v75, 0.0
    %vm655 = vcmp.gt.f32.partialorder %v76, 0.0
    %vm656 = vcmp.gt.f32.partialorder %v77, 0.0
    %v657 = vsel %vm654, %v651, -1e+30
    %v658 = vsel %vm655, %v652, -1e+30
    %v659 = vsel %vm656, %v653, -1e+30
    %v660 = vsel %vm78, %v657, -inf
    %661 = vmax.xlane.f32.xlu0 %v660
    %v662 = vpop.xlane.xlu0 %661
    %v663 = vsel %vm78, %v658, -inf
    %664 = vmax.xlane.f32.xlu0 %v663
    %v665 = vpop.xlane.xlu0 %664
    %v666 = vsel %vm78, %v659, -inf
    %667 = vmax.xlane.f32.xlu0 %v666
    %v668 = vpop.xlane.xlu0 %667
    %v669 = vsub.f32 %v657, %v662
    %v670 = vsub.f32 %v658, %v665
    %v671 = vsub.f32 %v659, %v668
    %v672 = vmul.f32 %v669, 1.442695
    %v673 = vpow.pop %v672
    %v674 = vmul.f32 %v670, 1.442695
    %v675 = vpow.pop %v674
    %v676 = vmul.f32 %v671, 1.442695
    %v677 = vpow.pop %v676
    %v678 = vsel %vm78, %v673, 0.0
    %679 = vadd.xlane.f32.xlu0 %v678
    %v680 = vpop.xlane.xlu0 %679
    %v681 = vsel %vm78, %v675, 0.0
    %682 = vadd.xlane.f32.xlu0 %v681
    %v683 = vpop.xlane.xlu0 %682
    %v684 = vsel %vm78, %v677, 0.0
    %685 = vadd.xlane.f32.xlu0 %v684
    %v686 = vpop.xlane.xlu0 %685
    %v687 = vrcp.pop %v680
    %v688 = vrcp.pop %v683
    %v689 = vrcp.pop %v686
    %v690 = vmul.f32 %v673, %v687
    %v691 = vmul.f32 %v675, %v688
    %v692 = vmul.f32 %v677, %v689
    %v693 = vld [vmem:[%s10] sm:$0x1]
    %v695 = vlaneseq
    %v696 = vshrl.u32 %v695, 7
    %v697 = vsub.s32 0, %v696
    %v698 = vrot.slane %v693, %v697
    %v701 = vsel %vm78, %v690, 0
    %v704 = vsel %vm78, %v691, 0
    %v707 = vsel %vm78, %v692, 0
    %709 = vmatprep.subr.mxu0 0.0
    %710 = vmatpush1.msra.mxu0 %v559
    %711 = vmatprep.subr.mxu0 0.0
    %712 = vmatpush1.msra.mxu0 %v564
    %713 = vmatprep.subr.mxu0 0.0
    %714 = vmatpush1.msra.mxu0 %v569
    %715 = vmatprep.subr.mxu0 0.0
    %716 = vmatpush1.msra.mxu0 0.0
    %717 = vmatprep.subr.mxu0 0.0
    %718 = vmatpush1.msra.mxu0 0.0
    %719 = vmatprep.subr.mxu0 0.0
    %720 = vmatpush1.msra.mxu0 0.0
    %721 = vmatprep.subr.mxu0 0.0
    %722 = vmatpush1.msra.mxu0 0.0
    %723 = vmatprep.subr.mxu0 0.0
    %724 = vmatpush1.msra.mxu0 0.0
    %725 = vmatprep.subr.mxu0 0.0
    %726 = vmatpush1.msra.mxu0 0.0
    %727 = vmatprep.subr.mxu0 0.0
    %728 = vmatpush1.msra.mxu0 0.0
    %729 = vmatprep.subr.mxu0 0.0
    %730 = vmatpush1.msra.mxu0 0.0
    %731 = vmatprep.subr.mxu0 0.0
    %732 = vmatpush1.msra.mxu0 0.0
    %733 = vmatprep.subr.mxu0 0.0
    %734 = vmatpush1.msra.mxu0 0.0
    %735 = vmatprep.subr.mxu0 0.0
    %736 = vmatpush1.msra.mxu0 0.0
    %737 = vmatprep.subr.mxu0 0.0
    %738 = vmatpush1.msra.mxu0 0.0
    %739 = vmatprep.subr.mxu0 0.0
    %740 = vmatpush1.msra.mxu0 0.0
    %741 = vmatprep.subr.mxu0 0.0
    %742 = vmatpush1.msra.mxu0 0.0
    %743 = vmatprep.subr.mxu0 0.0
    %744 = vmatpush1.msra.mxu0 0.0
    %745 = vmatprep.subr.mxu0 0.0
    %746 = vmatpush1.msra.mxu0 0.0
    %747 = vmatprep.subr.mxu0 0.0
    %748 = vmatpush1.msra.mxu0 0.0
    %749 = vmatprep.subr.mxu0 0.0
    %750 = vmatpush1.msra.mxu0 0.0
    %751 = vmatprep.subr.mxu0 0.0
    %752 = vmatpush1.msra.mxu0 0.0
    %753 = vmatprep.subr.mxu0 0.0
    %754 = vmatpush1.msra.mxu0 0.0
    %755 = vmatprep.subr.mxu0 0.0
    %756 = vmatpush1.msra.mxu0 0.0
    %757 = vmatprep.subr.mxu0 0.0
    %758 = vmatpush1.msra.mxu0 0.0
    %759 = vmatprep.subr.mxu0 0.0
    %760 = vmatpush1.msra.mxu0 0.0
    %761 = vmatprep.subr.mxu0 0.0
    %762 = vmatpush1.msra.mxu0 0.0
    %763 = vmatprep.subr.mxu0 0.0
    %764 = vmatpush1.msra.mxu0 0.0
    %765 = vmatprep.subr.mxu0 0.0
    %766 = vmatpush1.msra.mxu0 0.0
    %767 = vmatprep.subr.mxu0 0.0
    %768 = vmatpush1.msra.mxu0 0.0
    %769 = vmatprep.subr.mxu0 0.0
    %770 = vmatpush1.msra.mxu0 0.0
    %771 = vmatprep.subr.mxu0 0.0
    %772 = vmatpush1.msra.mxu0 0.0
    %773 = vmatprep.mubr.f32.mxu0 0.0
    %774 = vmatmul.mubr.f32.gmra.mrb[0].mxu0 %v701
    %v775 = vpop.f32.mrb[0].mxu0
    %v776 = vadd.f32 %v698, %v775
    %v777 = vpop.f32.mrb[0].mxu0
    %778 = vmatprep.mubr.f32.mxu0 0.0
    %779 = vmatmul.mubr.f32.gmra.mrb[0].mxu0 %v704
    %v780 = vpop.f32.mrb[0].mxu0
    %v781 = vadd.f32 %v698, %v780
    %v782 = vpop.f32.mrb[0].mxu0
    %783 = vmatprep.mubr.f32.mxu0 0.0
    %784 = vmatmul.mubr.f32.gmra.mrb[0].mxu0 %v707
    %v785 = vpop.f32.mrb[0].mxu0
    %v786 = vadd.f32 %v698, %v785
    %v787 = vpop.f32.mrb[0].mxu0
    %788 = vdwg.mxu0
    %v789 = vld [vmem:[%s11] sm:$0xff]
    %v790 = vld [vmem:[%s14] sm:$0x1]
    %v792 = vlaneseq
    %v793 = vshrl.u32 %v792, 7
    %v794 = vsub.s32 0, %v793
    %v795 = vrot.slane %v790, %v794
    %v798 = vsel %vm380, %v776, 0
    %v801 = vsel %vm380, %v781, 0
    %v804 = vsel %vm380, %v786, 0
    %806 = vmatprep.subr.mxu0 0.0
    %807 = vmatpush1.msra.mxu0 %v789
    %808 = vmatprep.subr.mxu0 0.0
    %809 = vmatpush1.msra.mxu0 0.0
    %810 = vmatprep.subr.mxu0 0.0
    %811 = vmatpush1.msra.mxu0 0.0
    %812 = vmatprep.subr.mxu0 0.0
    %813 = vmatpush1.msra.mxu0 0.0
    %814 = vmatprep.subr.mxu0 0.0
    %815 = vmatpush1.msra.mxu0 0.0
    %816 = vmatprep.subr.mxu0 0.0
    %817 = vmatpush1.msra.mxu0 0.0
    %818 = vmatprep.subr.mxu0 0.0
    %819 = vmatpush1.msra.mxu0 0.0
    %820 = vmatprep.subr.mxu0 0.0
    %821 = vmatpush1.msra.mxu0 0.0
    %822 = vmatprep.subr.mxu0 0.0
    %823 = vmatpush1.msra.mxu0 0.0
    %824 = vmatprep.subr.mxu0 0.0
    %825 = vmatpush1.msra.mxu0 0.0
    %826 = vmatprep.subr.mxu0 0.0
    %827 = vmatpush1.msra.mxu0 0.0
    %828 = vmatprep.subr.mxu0 0.0
    %829 = vmatpush1.msra.mxu0 0.0
    %830 = vmatprep.subr.mxu0 0.0
    %831 = vmatpush1.msra.mxu0 0.0
    %832 = vmatprep.subr.mxu0 0.0
    %833 = vmatpush1.msra.mxu0 0.0
    %834 = vmatprep.subr.mxu0 0.0
    %835 = vmatpush1.msra.mxu0 0.0
    %836 = vmatprep.subr.mxu0 0.0
    %837 = vmatpush1.msra.mxu0 0.0
    %838 = vmatprep.subr.mxu0 0.0
    %839 = vmatpush1.msra.mxu0 0.0
    %840 = vmatprep.subr.mxu0 0.0
    %841 = vmatpush1.msra.mxu0 0.0
    %842 = vmatprep.subr.mxu0 0.0
    %843 = vmatpush1.msra.mxu0 0.0
    %844 = vmatprep.subr.mxu0 0.0
    %845 = vmatpush1.msra.mxu0 0.0
    %846 = vmatprep.subr.mxu0 0.0
    %847 = vmatpush1.msra.mxu0 0.0
    %848 = vmatprep.subr.mxu0 0.0
    %849 = vmatpush1.msra.mxu0 0.0
    %850 = vmatprep.subr.mxu0 0.0
    %851 = vmatpush1.msra.mxu0 0.0
    %852 = vmatprep.subr.mxu0 0.0
    %853 = vmatpush1.msra.mxu0 0.0
    %854 = vmatprep.subr.mxu0 0.0
    %855 = vmatpush1.msra.mxu0 0.0
    %856 = vmatprep.subr.mxu0 0.0
    %857 = vmatpush1.msra.mxu0 0.0
    %858 = vmatprep.subr.mxu0 0.0
    %859 = vmatpush1.msra.mxu0 0.0
    %860 = vmatprep.subr.mxu0 0.0
    %861 = vmatpush1.msra.mxu0 0.0
    %862 = vmatprep.subr.mxu0 0.0
    %863 = vmatpush1.msra.mxu0 0.0
    %864 = vmatprep.subr.mxu0 0.0
    %865 = vmatpush1.msra.mxu0 0.0
    %866 = vmatprep.subr.mxu0 0.0
    %867 = vmatpush1.msra.mxu0 0.0
    %868 = vmatprep.subr.mxu0 0.0
    %869 = vmatpush1.msra.mxu0 0.0
    %870 = vmatprep.mubr.f32.mxu0 0.0
    %871 = vmatmul.mubr.f32.gmra.mrb[0].mxu0 %v798
    %v872 = vpop.f32.mrb[0].mxu0
    %v873 = vadd.f32 %v795, %v872
    %v874 = vpop.f32.mrb[0].mxu0
    %875 = vmatprep.mubr.f32.mxu0 0.0
    %876 = vmatmul.mubr.f32.gmra.mrb[0].mxu0 %v801
    %v877 = vpop.f32.mrb[0].mxu0
    %v878 = vadd.f32 %v795, %v877
    %v879 = vpop.f32.mrb[0].mxu0
    %880 = vmatprep.mubr.f32.mxu0 0.0
    %881 = vmatmul.mubr.f32.gmra.mrb[0].mxu0 %v804
    %v882 = vpop.f32.mrb[0].mxu0
    %v883 = vadd.f32 %v795, %v882
    %v884 = vpop.f32.mrb[0].mxu0
    %885 = vdwg.mxu0
    %v886 = vld [vmem:[%s12] sm:$0xff]
    %v887 = vld [vmem:[%s13] sm:$0xff]
    %v889 = vsel %vm380, 0.0, 0
    %891 = vmatprep.subr.mxu0 0.0
    %892 = vmatpush1.msra.mxu0 %v886
    %893 = vmatprep.subr.mxu0 0.0
    %894 = vmatpush1.msra.mxu0 0.0
    %895 = vmatprep.subr.mxu0 0.0
    %896 = vmatpush1.msra.mxu0 0.0
    %897 = vmatprep.subr.mxu0 0.0
    %898 = vmatpush1.msra.mxu0 0.0
    %899 = vmatprep.subr.mxu0 0.0
    %900 = vmatpush1.msra.mxu0 0.0
    %901 = vmatprep.subr.mxu0 0.0
    %902 = vmatpush1.msra.mxu0 0.0
    %903 = vmatprep.subr.mxu0 0.0
    %904 = vmatpush1.msra.mxu0 0.0
    %905 = vmatprep.subr.mxu0 0.0
    %906 = vmatpush1.msra.mxu0 0.0
    %907 = vmatprep.subr.mxu0 0.0
    %908 = vmatpush1.msra.mxu0 0.0
    %909 = vmatprep.subr.mxu0 0.0
    %910 = vmatpush1.msra.mxu0 0.0
    %911 = vmatprep.subr.mxu0 0.0
    %912 = vmatpush1.msra.mxu0 0.0
    %913 = vmatprep.subr.mxu0 0.0
    %914 = vmatpush1.msra.mxu0 0.0
    %915 = vmatprep.subr.mxu0 0.0
    %916 = vmatpush1.msra.mxu0 0.0
    %917 = vmatprep.subr.mxu0 0.0
    %918 = vmatpush1.msra.mxu0 0.0
    %919 = vmatprep.subr.mxu0 0.0
    %920 = vmatpush1.msra.mxu0 0.0
    %921 = vmatprep.subr.mxu0 0.0
    %922 = vmatpush1.msra.mxu0 0.0
    %923 = vmatprep.subr.mxu0 0.0
    %924 = vmatpush1.msra.mxu0 0.0
    %925 = vmatprep.subr.mxu0 0.0
    %926 = vmatpush1.msra.mxu0 0.0
    %927 = vmatprep.subr.mxu0 0.0
    %928 = vmatpush1.msra.mxu0 0.0
    %929 = vmatprep.subr.mxu0 0.0
    %930 = vmatpush1.msra.mxu0 0.0
    %931 = vmatprep.subr.mxu0 0.0
    %932 = vmatpush1.msra.mxu0 0.0
    %933 = vmatprep.subr.mxu0 0.0
    %934 = vmatpush1.msra.mxu0 0.0
    %935 = vmatprep.subr.mxu0 0.0
    %936 = vmatpush1.msra.mxu0 0.0
    %937 = vmatprep.subr.mxu0 0.0
    %938 = vmatpush1.msra.mxu0 0.0
    %939 = vmatprep.subr.mxu0 0.0
    %940 = vmatpush1.msra.mxu0 0.0
    %941 = vmatprep.subr.mxu0 0.0
    %942 = vmatpush1.msra.mxu0 0.0
    %943 = vmatprep.subr.mxu0 0.0
    %944 = vmatpush1.msra.mxu0 0.0
    %945 = vmatprep.subr.mxu0 0.0
    %946 = vmatpush1.msra.mxu0 0.0
    %947 = vmatprep.subr.mxu0 0.0
    %948 = vmatpush1.msra.mxu0 0.0
    %949 = vmatprep.subr.mxu0 0.0
    %950 = vmatpush1.msra.mxu0 0.0
    %951 = vmatprep.subr.mxu0 0.0
    %952 = vmatpush1.msra.mxu0 0.0
    %953 = vmatprep.subr.mxu0 0.0
    %954 = vmatpush1.msra.mxu0 0.0
    %955 = vmatprep.mubr.f32.mxu0 0.0
    %956 = vmatmul.mubr.f32.gmra.mrb[0].mxu0 %v889
    %v957 = vpop.f32.mrb[0].mxu0
    %v958 = vadd.f32 0.0, %v957
    %v959 = vpop.f32.mrb[0].mxu0
    %960 = vdwg.mxu0
    %v961 = vadd.f32 %v873, %v958
    %v962 = vxor.u32 %v961, 2147483648
    %v963 = vmul.f32 %v962, 1.442695
    %v964 = vpow.pop %v963
    %v965 = vadd.f32 %v964, 1.0
    %v966 = vrcp.pop %v965
    %v967 = vmul.f32 1.0, %v966
    %v968 = vtanh.pop %v961
    %v969 = vmul.f32 %v967, 0.0
    %971 = vrot.lane.b32.xlu0 %v968, 112
    %v972 = vpop.permute.xlu0 %971
    %v974 = vmul.f32 %v967, %v972
    %976 = vrot.lane.b32.xlu0 %v974, 8
    %v977 = vpop.permute.xlu0 %976
    %v979 = vadd.f32 %v969, %v977
    %v980 = vtanh.pop %v979
    %982 = vrot.lane.b32.xlu0 %v980, 16
    %v983 = vpop.permute.xlu0 %982
    %v985 = vmul.f32 %v967, %v983
    %987 = vrot.lane.b32.xlu0 %v985, 104
    %v988 = vpop.permute.xlu0 %987
    %990 = vst.msk [vmem:[#allocation2] sm:$0xff] %vm380, %v988
    %v991 = vsel %vm380, %v988, 0
    %993 = vmatprep.subr.mxu0 0.0
    %994 = vmatpush1.msra.mxu0 %v886
    %995 = vmatprep.subr.mxu0 0.0
    %996 = vmatpush1.msra.mxu0 0.0
    %997 = vmatprep.subr.mxu0 0.0
    %998 = vmatpush1.msra.mxu0 0.0
    %999 = vmatprep.subr.mxu0 0.0
    %1000 = vmatpush1.msra.mxu0 0.0
    %1001 = vmatprep.subr.mxu0 0.0
    %1002 = vmatpush1.msra.mxu0 0.0
    %1003 = vmatprep.subr.mxu0 0.0
    %1004 = vmatpush1.msra.mxu0 0.0
    %1005 = vmatprep.subr.mxu0 0.0
    %1006 = vmatpush1.msra.mxu0 0.0
    %1007 = vmatprep.subr.mxu0 0.0
    %1008 = vmatpush1.msra.mxu0 0.0
    %1009 = vmatprep.subr.mxu0 0.0
    %1010 = vmatpush1.msra.mxu0 0.0
    %1011 = vmatprep.subr.mxu0 0.0
    %1012 = vmatpush1.msra.mxu0 0.0
    %1013 = vmatprep.subr.mxu0 0.0
    %1014 = vmatpush1.msra.mxu0 0.0
    %1015 = vmatprep.subr.mxu0 0.0
    %1016 = vmatpush1.msra.mxu0 0.0
    %1017 = vmatprep.subr.mxu0 0.0
    %1018 = vmatpush1.msra.mxu0 0.0
    %1019 = vmatprep.subr.mxu0 0.0
    %1020 = vmatpush1.msra.mxu0 0.0
    %1021 = vmatprep.subr.mxu0 0.0
    %1022 = vmatpush1.msra.mxu0 0.0
    %1023 = vmatprep.subr.mxu0 0.0
    %1024 = vmatpush1.msra.mxu0 0.0
    %1025 = vmatprep.subr.mxu0 0.0
    %1026 = vmatpush1.msra.mxu0 0.0
    %1027 = vmatprep.subr.mxu0 0.0
    %1028 = vmatpush1.msra.mxu0 0.0
    %1029 = vmatprep.subr.mxu0 0.0
    %1030 = vmatpush1.msra.mxu0 0.0
    %1031 = vmatprep.subr.mxu0 0.0
    %1032 = vmatpush1.msra.mxu0 0.0
    %1033 = vmatprep.subr.mxu0 0.0
    %1034 = vmatpush1.msra.mxu0 0.0
    %1035 = vmatprep.subr.mxu0 0.0
    %1036 = vmatpush1.msra.mxu0 0.0
    %1037 = vmatprep.subr.mxu0 0.0
    %1038 = vmatpush1.msra.mxu0 0.0
    %1039 = vmatprep.subr.mxu0 0.0
    %1040 = vmatpush1.msra.mxu0 0.0
    %1041 = vmatprep.subr.mxu0 0.0
    %1042 = vmatpush1.msra.mxu0 0.0
    %1043 = vmatprep.subr.mxu0 0.0
    %1044 = vmatpush1.msra.mxu0 0.0
    %1045 = vmatprep.subr.mxu0 0.0
    %1046 = vmatpush1.msra.mxu0 0.0
    %1047 = vmatprep.subr.mxu0 0.0
    %1048 = vmatpush1.msra.mxu0 0.0
    %1049 = vmatprep.subr.mxu0 0.0
    %1050 = vmatpush1.msra.mxu0 0.0
    %1051 = vmatprep.subr.mxu0 0.0
    %1052 = vmatpush1.msra.mxu0 0.0
    %1053 = vmatprep.subr.mxu0 0.0
    %1054 = vmatpush1.msra.mxu0 0.0
    %1055 = vmatprep.subr.mxu0 0.0
    %1056 = vmatpush1.msra.mxu0 0.0
    %1057 = vmatprep.mubr.f32.mxu0 0.0
    %1058 = vmatmul.mubr.f32.gmra.mrb[0].mxu0 %v991
    %v1059 = vpop.f32.mrb[0].mxu0
    %v1060 = vadd.f32 0.0, %v1059
    %v1061 = vpop.f32.mrb[0].mxu0
    %1062 = vdwg.mxu0
    %v1063 = vadd.f32 %v878, %v1060
    %v1064 = vxor.u32 %v1063, 2147483648
    %v1065 = vmul.f32 %v1064, 1.442695
    %v1066 = vpow.pop %v1065
    %v1067 = vadd.f32 %v1066, 1.0
    %v1068 = vrcp.pop %v1067
    %v1069 = vmul.f32 1.0, %v1068
    %v1070 = vtanh.pop %v1063
    %v1071 = vmul.f32 %v1069, %v979
    %1073 = vrot.lane.b32.xlu0 %v1070, 112
    %v1074 = vpop.permute.xlu0 %1073
    %v1076 = vmul.f32 %v1069, %v1074
    %1078 = vrot.lane.b32.xlu0 %v1076, 8
    %v1079 = vpop.permute.xlu0 %1078
    %v1081 = vadd.f32 %v1071, %v1079
    %v1082 = vtanh.pop %v1081
    %1084 = vrot.lane.b32.xlu0 %v1082, 16
    %v1085 = vpop.permute.xlu0 %1084
    %v1087 = vmul.f32 %v1069, %v1085
    %1089 = vrot.lane.b32.xlu0 %v1087, 104
    %v1090 = vpop.permute.xlu0 %1089
    %1092 = vst.msk [vmem:[#allocation2 + $0x8] sm:$0xff] %vm380, %v1090
    %v1093 = vsel %vm380, %v1090, 0
    %1095 = vmatprep.subr.mxu0 0.0
    %1096 = vmatpush1.msra.mxu0 %v886
    %1097 = vmatprep.subr.mxu0 0.0
    %1098 = vmatpush1.msra.mxu0 0.0
    %1099 = vmatprep.subr.mxu0 0.0
    %1100 = vmatpush1.msra.mxu0 0.0
    %1101 = vmatprep.subr.mxu0 0.0
    %1102 = vmatpush1.msra.mxu0 0.0
    %1103 = vmatprep.subr.mxu0 0.0
    %1104 = vmatpush1.msra.mxu0 0.0
    %1105 = vmatprep.subr.mxu0 0.0
    %1106 = vmatpush1.msra.mxu0 0.0
    %1107 = vmatprep.subr.mxu0 0.0
    %1108 = vmatpush1.msra.mxu0 0.0
    %1109 = vmatprep.subr.mxu0 0.0
    %1110 = vmatpush1.msra.mxu0 0.0
    %1111 = vmatprep.subr.mxu0 0.0
    %1112 = vmatpush1.msra.mxu0 0.0
    %1113 = vmatprep.subr.mxu0 0.0
    %1114 = vmatpush1.msra.mxu0 0.0
    %1115 = vmatprep.subr.mxu0 0.0
    %1116 = vmatpush1.msra.mxu0 0.0
    %1117 = vmatprep.subr.mxu0 0.0
    %1118 = vmatpush1.msra.mxu0 0.0
    %1119 = vmatprep.subr.mxu0 0.0
    %1120 = vmatpush1.msra.mxu0 0.0
    %1121 = vmatprep.subr.mxu0 0.0
    %1122 = vmatpush1.msra.mxu0 0.0
    %1123 = vmatprep.subr.mxu0 0.0
    %1124 = vmatpush1.msra.mxu0 0.0
    %1125 = vmatprep.subr.mxu0 0.0
    %1126 = vmatpush1.msra.mxu0 0.0
    %1127 = vmatprep.subr.mxu0 0.0
    %1128 = vmatpush1.msra.mxu0 0.0
    %1129 = vmatprep.subr.mxu0 0.0
    %1130 = vmatpush1.msra.mxu0 0.0
    %1131 = vmatprep.subr.mxu0 0.0
    %1132 = vmatpush1.msra.mxu0 0.0
    %1133 = vmatprep.subr.mxu0 0.0
    %1134 = vmatpush1.msra.mxu0 0.0
    %1135 = vmatprep.subr.mxu0 0.0
    %1136 = vmatpush1.msra.mxu0 0.0
    %1137 = vmatprep.subr.mxu0 0.0
    %1138 = vmatpush1.msra.mxu0 0.0
    %1139 = vmatprep.subr.mxu0 0.0
    %1140 = vmatpush1.msra.mxu0 0.0
    %1141 = vmatprep.subr.mxu0 0.0
    %1142 = vmatpush1.msra.mxu0 0.0
    %1143 = vmatprep.subr.mxu0 0.0
    %1144 = vmatpush1.msra.mxu0 0.0
    %1145 = vmatprep.subr.mxu0 0.0
    %1146 = vmatpush1.msra.mxu0 0.0
    %1147 = vmatprep.subr.mxu0 0.0
    %1148 = vmatpush1.msra.mxu0 0.0
    %1149 = vmatprep.subr.mxu0 0.0
    %1150 = vmatpush1.msra.mxu0 0.0
    %1151 = vmatprep.subr.mxu0 0.0
    %1152 = vmatpush1.msra.mxu0 0.0
    %1153 = vmatprep.subr.mxu0 0.0
    %1154 = vmatpush1.msra.mxu0 0.0
    %1155 = vmatprep.subr.mxu0 0.0
    %1156 = vmatpush1.msra.mxu0 0.0
    %1157 = vmatprep.subr.mxu0 0.0
    %1158 = vmatpush1.msra.mxu0 0.0
    %1159 = vmatprep.mubr.f32.mxu0 0.0
    %1160 = vmatmul.mubr.f32.gmra.mrb[0].mxu0 %v1093
    %v1161 = vpop.f32.mrb[0].mxu0
    %v1162 = vadd.f32 0.0, %v1161
    %v1163 = vpop.f32.mrb[0].mxu0
    %1164 = vdwg.mxu0
    %v1165 = vadd.f32 %v883, %v1162
    %v1166 = vxor.u32 %v1165, 2147483648
    %v1167 = vmul.f32 %v1166, 1.442695
    %v1168 = vpow.pop %v1167
    %v1169 = vadd.f32 %v1168, 1.0
    %v1170 = vrcp.pop %v1169
    %v1171 = vmul.f32 1.0, %v1170
    %v1172 = vtanh.pop %v1165
    %v1173 = vmul.f32 %v1171, %v1081
    %1175 = vrot.lane.b32.xlu0 %v1172, 112
    %v1176 = vpop.permute.xlu0 %1175
    %v1178 = vmul.f32 %v1171, %v1176
    %1180 = vrot.lane.b32.xlu0 %v1178, 8
    %v1181 = vpop.permute.xlu0 %1180
    %v1183 = vadd.f32 %v1173, %v1181
    %v1184 = vtanh.pop %v1183
    %1186 = vrot.lane.b32.xlu0 %v1184, 16
    %v1187 = vpop.permute.xlu0 %1186
    %v1189 = vmul.f32 %v1171, %v1187
    %1191 = vrot.lane.b32.xlu0 %v1189, 104
    %v1192 = vpop.permute.xlu0 %1191
    %1194 = vst.msk [vmem:[#allocation2 + $0x10] sm:$0xff] %vm380, %v1192
    %1195 = vmatprep.subr.mxu0 0.0
    %1196 = vmatpush1.msra.mxu0 %v887
    %1197 = vmatprep.subr.mxu0 0.0
    %1198 = vmatpush1.msra.mxu0 0.0
    %1199 = vmatprep.subr.mxu0 0.0
    %1200 = vmatpush1.msra.mxu0 0.0
    %1201 = vmatprep.subr.mxu0 0.0
    %1202 = vmatpush1.msra.mxu0 0.0
    %1203 = vmatprep.subr.mxu0 0.0
    %1204 = vmatpush1.msra.mxu0 0.0
    %1205 = vmatprep.subr.mxu0 0.0
    %1206 = vmatpush1.msra.mxu0 0.0
    %1207 = vmatprep.subr.mxu0 0.0
    %1208 = vmatpush1.msra.mxu0 0.0
    %1209 = vmatprep.subr.mxu0 0.0
    %1210 = vmatpush1.msra.mxu0 0.0
    %1211 = vmatprep.subr.mxu0 0.0
    %1212 = vmatpush1.msra.mxu0 0.0
    %1213 = vmatprep.subr.mxu0 0.0
    %1214 = vmatpush1.msra.mxu0 0.0
    %1215 = vmatprep.subr.mxu0 0.0
    %1216 = vmatpush1.msra.mxu0 0.0
    %1217 = vmatprep.subr.mxu0 0.0
    %1218 = vmatpush1.msra.mxu0 0.0
    %1219 = vmatprep.subr.mxu0 0.0
    %1220 = vmatpush1.msra.mxu0 0.0
    %1221 = vmatprep.subr.mxu0 0.0
    %1222 = vmatpush1.msra.mxu0 0.0
    %1223 = vmatprep.subr.mxu0 0.0
    %1224 = vmatpush1.msra.mxu0 0.0
    %1225 = vmatprep.subr.mxu0 0.0
    %1226 = vmatpush1.msra.mxu0 0.0
    %1227 = vmatprep.subr.mxu0 0.0
    %1228 = vmatpush1.msra.mxu0 0.0
    %1229 = vmatprep.subr.mxu0 0.0
    %1230 = vmatpush1.msra.mxu0 0.0
    %1231 = vmatprep.subr.mxu0 0.0
    %1232 = vmatpush1.msra.mxu0 0.0
    %1233 = vmatprep.subr.mxu0 0.0
    %1234 = vmatpush1.msra.mxu0 0.0
    %1235 = vmatprep.subr.mxu0 0.0
    %1236 = vmatpush1.msra.mxu0 0.0
    %1237 = vmatprep.subr.mxu0 0.0
    %1238 = vmatpush1.msra.mxu0 0.0
    %1239 = vmatprep.subr.mxu0 0.0
    %1240 = vmatpush1.msra.mxu0 0.0
    %1241 = vmatprep.subr.mxu0 0.0
    %1242 = vmatpush1.msra.mxu0 0.0
    %1243 = vmatprep.subr.mxu0 0.0
    %1244 = vmatpush1.msra.mxu0 0.0
    %1245 = vmatprep.subr.mxu0 0.0
    %1246 = vmatpush1.msra.mxu0 0.0
    %1247 = vmatprep.subr.mxu0 0.0
    %1248 = vmatpush1.msra.mxu0 0.0
    %1249 = vmatprep.subr.mxu0 0.0
    %1250 = vmatpush1.msra.mxu0 0.0
    %1251 = vmatprep.subr.mxu0 0.0
    %1252 = vmatpush1.msra.mxu0 0.0
    %1253 = vmatprep.subr.mxu0 0.0
    %1254 = vmatpush1.msra.mxu0 0.0
    %1255 = vmatprep.subr.mxu0 0.0
    %1256 = vmatpush1.msra.mxu0 0.0
    %1257 = vmatprep.subr.mxu0 0.0
    %1258 = vmatpush1.msra.mxu0 0.0
    %1259 = vmatprep.mubr.f32.mxu0 0.0
    %1260 = vmatmul.mubr.f32.gmra.mrb[0].mxu0 %v889
    %v1261 = vpop.f32.mrb[0].mxu0
    %v1262 = vadd.f32 0.0, %v1261
    %v1263 = vpop.f32.mrb[0].mxu0
    %1264 = vdwg.mxu0
    %1266 = vrot.lane.b32.xlu0 %v1262, 32
    %v1267 = vpop.permute.xlu0 %1266
    %v1269 = vadd.f32 %v883, %v1267
    %v1270 = vxor.u32 %v1269, 2147483648
    %v1271 = vmul.f32 %v1270, 1.442695
    %v1272 = vpow.pop %v1271
    %v1273 = vadd.f32 %v1272, 1.0
    %v1274 = vrcp.pop %v1273
    %v1275 = vmul.f32 1.0, %v1274
    %v1276 = vtanh.pop %v1269
    %v1277 = vmul.f32 %v1275, 0.0
    %1279 = vrot.lane.b32.xlu0 %v1276, 112
    %v1280 = vpop.permute.xlu0 %1279
    %v1282 = vmul.f32 %v1275, %v1280
    %1284 = vrot.lane.b32.xlu0 %v1282, 8
    %v1285 = vpop.permute.xlu0 %1284
    %v1287 = vadd.f32 %v1277, %v1285
    %v1288 = vtanh.pop %v1287
    %1290 = vrot.lane.b32.xlu0 %v1288, 16
    %v1291 = vpop.permute.xlu0 %1290
    %v1293 = vmul.f32 %v1275, %v1291
    %1295 = vrot.lane.b32.xlu0 %v1293, 72
    %v1296 = vpop.permute.xlu0 %1295
    %1298 = vst.msk [vmem:[#allocation3 + $0x10] sm:$0xff] %vm380, %v1296
    %v1299 = vsel %vm380, %v1296, 0
    %1301 = vmatprep.subr.mxu0 0.0
    %1302 = vmatpush1.msra.mxu0 %v887
    %1303 = vmatprep.subr.mxu0 0.0
    %1304 = vmatpush1.msra.mxu0 0.0
    %1305 = vmatprep.subr.mxu0 0.0
    %1306 = vmatpush1.msra.mxu0 0.0
    %1307 = vmatprep.subr.mxu0 0.0
    %1308 = vmatpush1.msra.mxu0 0.0
    %1309 = vmatprep.subr.mxu0 0.0
    %1310 = vmatpush1.msra.mxu0 0.0
    %1311 = vmatprep.subr.mxu0 0.0
    %1312 = vmatpush1.msra.mxu0 0.0
    %1313 = vmatprep.subr.mxu0 0.0
    %1314 = vmatpush1.msra.mxu0 0.0
    %1315 = vmatprep.subr.mxu0 0.0
    %1316 = vmatpush1.msra.mxu0 0.0
    %1317 = vmatprep.subr.mxu0 0.0
    %1318 = vmatpush1.msra.mxu0 0.0
    %1319 = vmatprep.subr.mxu0 0.0
    %1320 = vmatpush1.msra.mxu0 0.0
    %1321 = vmatprep.subr.mxu0 0.0
    %1322 = vmatpush1.msra.mxu0 0.0
    %1323 = vmatprep.subr.mxu0 0.0
    %1324 = vmatpush1.msra.mxu0 0.0
    %1325 = vmatprep.subr.mxu0 0.0
    %1326 = vmatpush1.msra.mxu0 0.0
    %1327 = vmatprep.subr.mxu0 0.0
    %1328 = vmatpush1.msra.mxu0 0.0
    %1329 = vmatprep.subr.mxu0 0.0
    %1330 = vmatpush1.msra.mxu0 0.0
    %1331 = vmatprep.subr.mxu0 0.0
    %1332 = vmatpush1.msra.mxu0 0.0
    %1333 = vmatprep.subr.mxu0 0.0
    %1334 = vmatpush1.msra.mxu0 0.0
    %1335 = vmatprep.subr.mxu0 0.0
    %1336 = vmatpush1.msra.mxu0 0.0
    %1337 = vmatprep.subr.mxu0 0.0
    %1338 = vmatpush1.msra.mxu0 0.0
    %1339 = vmatprep.subr.mxu0 0.0
    %1340 = vmatpush1.msra.mxu0 0.0
    %1341 = vmatprep.subr.mxu0 0.0
    %1342 = vmatpush1.msra.mxu0 0.0
    %1343 = vmatprep.subr.mxu0 0.0
    %1344 = vmatpush1.msra.mxu0 0.0
    %1345 = vmatprep.subr.mxu0 0.0
    %1346 = vmatpush1.msra.mxu0 0.0
    %1347 = vmatprep.subr.mxu0 0.0
    %1348 = vmatpush1.msra.mxu0 0.0
    %1349 = vmatprep.subr.mxu0 0.0
    %1350 = vmatpush1.msra.mxu0 0.0
    %1351 = vmatprep.subr.mxu0 0.0
    %1352 = vmatpush1.msra.mxu0 0.0
    %1353 = vmatprep.subr.mxu0 0.0
    %1354 = vmatpush1.msra.mxu0 0.0
    %1355 = vmatprep.subr.mxu0 0.0
    %1356 = vmatpush1.msra.mxu0 0.0
    %1357 = vmatprep.subr.mxu0 0.0
    %1358 = vmatpush1.msra.mxu0 0.0
    %1359 = vmatprep.subr.mxu0 0.0
    %1360 = vmatpush1.msra.mxu0 0.0
    %1361 = vmatprep.subr.mxu0 0.0
    %1362 = vmatpush1.msra.mxu0 0.0
    %1363 = vmatprep.subr.mxu0 0.0
    %1364 = vmatpush1.msra.mxu0 0.0
    %1365 = vmatprep.mubr.f32.mxu0 0.0
    %1366 = vmatmul.mubr.f32.gmra.mrb[0].mxu0 %v1299
    %v1367 = vpop.f32.mrb[0].mxu0
    %v1368 = vadd.f32 0.0, %v1367
    %v1369 = vpop.f32.mrb[0].mxu0
    %1370 = vdwg.mxu0
    %1372 = vrot.lane.b32.xlu0 %v1368, 32
    %v1373 = vpop.permute.xlu0 %1372
    %v1375 = vadd.f32 %v878, %v1373
    %v1376 = vxor.u32 %v1375, 2147483648
    %v1377 = vmul.f32 %v1376, 1.442695
    %v1378 = vpow.pop %v1377
    %v1379 = vadd.f32 %v1378, 1.0
    %v1380 = vrcp.pop %v1379
    %v1381 = vmul.f32 1.0, %v1380
    %v1382 = vtanh.pop %v1375
    %v1383 = vmul.f32 %v1381, %v1287
    %1385 = vrot.lane.b32.xlu0 %v1382, 112
    %v1386 = vpop.permute.xlu0 %1385
    %v1388 = vmul.f32 %v1381, %v1386
    %1390 = vrot.lane.b32.xlu0 %v1388, 8
    %v1391 = vpop.permute.xlu0 %1390
    %v1393 = vadd.f32 %v1383, %v1391
    %v1394 = vtanh.pop %v1393
    %1396 = vrot.lane.b32.xlu0 %v1394, 16
    %v1397 = vpop.permute.xlu0 %1396
    %v1399 = vmul.f32 %v1381, %v1397
    %1401 = vrot.lane.b32.xlu0 %v1399, 72
    %v1402 = vpop.permute.xlu0 %1401
    %1404 = vst.msk [vmem:[#allocation3 + $0x8] sm:$0xff] %vm380, %v1402
    %v1405 = vsel %vm380, %v1402, 0
    %1407 = vmatprep.subr.mxu0 0.0
    %1408 = vmatpush1.msra.mxu0 %v887
    %1409 = vmatprep.subr.mxu0 0.0
    %1410 = vmatpush1.msra.mxu0 0.0
    %1411 = vmatprep.subr.mxu0 0.0
    %1412 = vmatpush1.msra.mxu0 0.0
    %1413 = vmatprep.subr.mxu0 0.0
    %1414 = vmatpush1.msra.mxu0 0.0
    %1415 = vmatprep.subr.mxu0 0.0
    %1416 = vmatpush1.msra.mxu0 0.0
    %1417 = vmatprep.subr.mxu0 0.0
    %1418 = vmatpush1.msra.mxu0 0.0
    %1419 = vmatprep.subr.mxu0 0.0
    %1420 = vmatpush1.msra.mxu0 0.0
    %1421 = vmatprep.subr.mxu0 0.0
    %1422 = vmatpush1.msra.mxu0 0.0
    %1423 = vmatprep.subr.mxu0 0.0
    %1424 = vmatpush1.msra.mxu0 0.0
    %1425 = vmatprep.subr.mxu0 0.0
    %1426 = vmatpush1.msra.mxu0 0.0
    %1427 = vmatprep.subr.mxu0 0.0
    %1428 = vmatpush1.msra.mxu0 0.0
    %1429 = vmatprep.subr.mxu0 0.0
    %1430 = vmatpush1.msra.mxu0 0.0
    %1431 = vmatprep.subr.mxu0 0.0
    %1432 = vmatpush1.msra.mxu0 0.0
    %1433 = vmatprep.subr.mxu0 0.0
    %1434 = vmatpush1.msra.mxu0 0.0
    %1435 = vmatprep.subr.mxu0 0.0
    %1436 = vmatpush1.msra.mxu0 0.0
    %1437 = vmatprep.subr.mxu0 0.0
    %1438 = vmatpush1.msra.mxu0 0.0
    %1439 = vmatprep.subr.mxu0 0.0
    %1440 = vmatpush1.msra.mxu0 0.0
    %1441 = vmatprep.subr.mxu0 0.0
    %1442 = vmatpush1.msra.mxu0 0.0
    %1443 = vmatprep.subr.mxu0 0.0
    %1444 = vmatpush1.msra.mxu0 0.0
    %1445 = vmatprep.subr.mxu0 0.0
    %1446 = vmatpush1.msra.mxu0 0.0
    %1447 = vmatprep.subr.mxu0 0.0
    %1448 = vmatpush1.msra.mxu0 0.0
    %1449 = vmatprep.subr.mxu0 0.0
    %1450 = vmatpush1.msra.mxu0 0.0
    %1451 = vmatprep.subr.mxu0 0.0
    %1452 = vmatpush1.msra.mxu0 0.0
    %1453 = vmatprep.subr.mxu0 0.0
    %1454 = vmatpush1.msra.mxu0 0.0
    %1455 = vmatprep.subr.mxu0 0.0
    %1456 = vmatpush1.msra.mxu0 0.0
    %1457 = vmatprep.subr.mxu0 0.0
    %1458 = vmatpush1.msra.mxu0 0.0
    %1459 = vmatprep.subr.mxu0 0.0
    %1460 = vmatpush1.msra.mxu0 0.0
    %1461 = vmatprep.subr.mxu0 0.0
    %1462 = vmatpush1.msra.mxu0 0.0
    %1463 = vmatprep.subr.mxu0 0.0
    %1464 = vmatpush1.msra.mxu0 0.0
    %1465 = vmatprep.subr.mxu0 0.0
    %1466 = vmatpush1.msra.mxu0 0.0
    %1467 = vmatprep.subr.mxu0 0.0
    %1468 = vmatpush1.msra.mxu0 0.0
    %1469 = vmatprep.subr.mxu0 0.0
    %1470 = vmatpush1.msra.mxu0 0.0
    %1471 = vmatprep.mubr.f32.mxu0 0.0
    %1472 = vmatmul.mubr.f32.gmra.mrb[0].mxu0 %v1405
    %v1473 = vpop.f32.mrb[0].mxu0
    %v1474 = vadd.f32 0.0, %v1473
    %v1475 = vpop.f32.mrb[0].mxu0
    %1476 = vdwg.mxu0
    %1478 = vrot.lane.b32.xlu0 %v1474, 32
    %v1479 = vpop.permute.xlu0 %1478
    %v1481 = vadd.f32 %v873, %v1479
    %v1482 = vxor.u32 %v1481, 2147483648
    %v1483 = vmul.f32 %v1482, 1.442695
    %v1484 = vpow.pop %v1483
    %v1485 = vadd.f32 %v1484, 1.0
    %v1486 = vrcp.pop %v1485
    %v1487 = vmul.f32 1.0, %v1486
    %v1488 = vtanh.pop %v1481
    %v1489 = vmul.f32 %v1487, %v1393
    %1491 = vrot.lane.b32.xlu0 %v1488, 112
    %v1492 = vpop.permute.xlu0 %1491
    %v1494 = vmul.f32 %v1487, %v1492
    %1496 = vrot.lane.b32.xlu0 %v1494, 8
    %v1497 = vpop.permute.xlu0 %1496
    %v1499 = vadd.f32 %v1489, %v1497
    %v1500 = vtanh.pop %v1499
    %1502 = vrot.lane.b32.xlu0 %v1500, 16
    %v1503 = vpop.permute.xlu0 %1502
    %v1505 = vmul.f32 %v1487, %v1503
    %1507 = vrot.lane.b32.xlu0 %v1505, 72
    %v1508 = vpop.permute.xlu0 %1507
    %1510 = vst.msk [vmem:[#allocation3] sm:$0xff] %vm380, %v1508
    %v1511 = vld [vmem:[#allocation2] sm:$0xff]
    %v1512 = vld [vmem:[#allocation2 + $0x8] sm:$0xff]
    %v1513 = vld [vmem:[#allocation2 + $0x10] sm:$0xff]
    %v1514 = vld [vmem:[%s15] sm:$0xff]
    %v1515 = vld [vmem:[#allocation3] sm:$0xff]
    %v1516 = vld [vmem:[#allocation3 + $0x8] sm:$0xff]
    %v1517 = vld [vmem:[#allocation3 + $0x10] sm:$0xff]
    %v1518 = vld [vmem:[%s16] sm:$0xff]
    %v1520 = vsel %vm380, %v1515, 0
    %v1523 = vsel %vm380, %v1516, 0
    %v1526 = vsel %vm380, %v1517, 0
    %1528 = vmatprep.subr.mxu0 0.0
    %1529 = vmatpush1.msra.mxu0 %v1518
    %1530 = vmatprep.subr.mxu0 0.0
    %1531 = vmatpush1.msra.mxu0 0.0
    %1532 = vmatprep.subr.mxu0 0.0
    %1533 = vmatpush1.msra.mxu0 0.0
    %1534 = vmatprep.subr.mxu0 0.0
    %1535 = vmatpush1.msra.mxu0 0.0
    %1536 = vmatprep.subr.mxu0 0.0
    %1537 = vmatpush1.msra.mxu0 0.0
    %1538 = vmatprep.subr.mxu0 0.0
    %1539 = vmatpush1.msra.mxu0 0.0
    %1540 = vmatprep.subr.mxu0 0.0
    %1541 = vmatpush1.msra.mxu0 0.0
    %1542 = vmatprep.subr.mxu0 0.0
    %1543 = vmatpush1.msra.mxu0 0.0
    %1544 = vmatprep.subr.mxu0 0.0
    %1545 = vmatpush1.msra.mxu0 0.0
    %1546 = vmatprep.subr.mxu0 0.0
    %1547 = vmatpush1.msra.mxu0 0.0
    %1548 = vmatprep.subr.mxu0 0.0
    %1549 = vmatpush1.msra.mxu0 0.0
    %1550 = vmatprep.subr.mxu0 0.0
    %1551 = vmatpush1.msra.mxu0 0.0
    %1552 = vmatprep.subr.mxu0 0.0
    %1553 = vmatpush1.msra.mxu0 0.0
    %1554 = vmatprep.subr.mxu0 0.0
    %1555 = vmatpush1.msra.mxu0 0.0
    %1556 = vmatprep.subr.mxu0 0.0
    %1557 = vmatpush1.msra.mxu0 0.0
    %1558 = vmatprep.subr.mxu0 0.0
    %1559 = vmatpush1.msra.mxu0 0.0
    %1560 = vmatprep.subr.mxu0 0.0
    %1561 = vmatpush1.msra.mxu0 0.0
    %1562 = vmatprep.subr.mxu0 0.0
    %1563 = vmatpush1.msra.mxu0 0.0
    %1564 = vmatprep.subr.mxu0 0.0
    %1565 = vmatpush1.msra.mxu0 0.0
    %1566 = vmatprep.subr.mxu0 0.0
    %1567 = vmatpush1.msra.mxu0 0.0
    %1568 = vmatprep.subr.mxu0 0.0
    %1569 = vmatpush1.msra.mxu0 0.0
    %1570 = vmatprep.subr.mxu0 0.0
    %1571 = vmatpush1.msra.mxu0 0.0
    %1572 = vmatprep.subr.mxu0 0.0
    %1573 = vmatpush1.msra.mxu0 0.0
    %1574 = vmatprep.subr.mxu0 0.0
    %1575 = vmatpush1.msra.mxu0 0.0
    %1576 = vmatprep.subr.mxu0 0.0
    %1577 = vmatpush1.msra.mxu0 0.0
    %1578 = vmatprep.subr.mxu0 0.0
    %1579 = vmatpush1.msra.mxu0 0.0
    %1580 = vmatprep.subr.mxu0 0.0
    %1581 = vmatpush1.msra.mxu0 0.0
    %1582 = vmatprep.subr.mxu0 0.0
    %1583 = vmatpush1.msra.mxu0 0.0
    %1584 = vmatprep.subr.mxu0 0.0
    %1585 = vmatpush1.msra.mxu0 0.0
    %1586 = vmatprep.subr.mxu0 0.0
    %1587 = vmatpush1.msra.mxu0 0.0
    %1588 = vmatprep.subr.mxu0 0.0
    %1589 = vmatpush1.msra.mxu0 0.0
    %1590 = vmatprep.subr.mxu0 0.0
    %1591 = vmatpush1.msra.mxu0 0.0
    %1592 = vmatprep.mubr.f32.mxu0 0.0
    %1593 = vmatmul.mubr.f32.gmra.mrb[0].mxu0 %v1520
    %v1594 = vpop.f32.mrb[0].mxu0
    %v1595 = vadd.f32 0.0, %v1594
    %v1596 = vpop.f32.mrb[0].mxu0
    %1597 = vmatprep.mubr.f32.mxu0 0.0
    %1598 = vmatmul.mubr.f32.gmra.mrb[0].mxu0 %v1523
    %v1599 = vpop.f32.mrb[0].mxu0
    %v1600 = vadd.f32 0.0, %v1599
    %v1601 = vpop.f32.mrb[0].mxu0
    %1602 = vmatprep.mubr.f32.mxu0 0.0
    %1603 = vmatmul.mubr.f32.gmra.mrb[0].mxu0 %v1526
    %v1604 = vpop.f32.mrb[0].mxu0
    %v1605 = vadd.f32 0.0, %v1604
    %v1606 = vpop.f32.mrb[0].mxu0
    %1607 = vdwg.mxu0
    %v1609 = vsel %vm380, %v1511, 0
    %v1612 = vsel %vm380, %v1512, 0
    %v1615 = vsel %vm380, %v1513, 0
    %1617 = vmatprep.subr.mxu0 0.0
    %1618 = vmatpush1.msra.mxu0 %v1514
    %1619 = vmatprep.subr.mxu0 0.0
    %1620 = vmatpush1.msra.mxu0 0.0
    %1621 = vmatprep.subr.mxu0 0.0
    %1622 = vmatpush1.msra.mxu0 0.0
    %1623 = vmatprep.subr.mxu0 0.0
    %1624 = vmatpush1.msra.mxu0 0.0
    %1625 = vmatprep.subr.mxu0 0.0
    %1626 = vmatpush1.msra.mxu0 0.0
    %1627 = vmatprep.subr.mxu0 0.0
    %1628 = vmatpush1.msra.mxu0 0.0
    %1629 = vmatprep.subr.mxu0 0.0
    %1630 = vmatpush1.msra.mxu0 0.0
    %1631 = vmatprep.subr.mxu0 0.0
    %1632 = vmatpush1.msra.mxu0 0.0
    %1633 = vmatprep.subr.mxu0 0.0
    %1634 = vmatpush1.msra.mxu0 0.0
    %1635 = vmatprep.subr.mxu0 0.0
    %1636 = vmatpush1.msra.mxu0 0.0
    %1637 = vmatprep.subr.mxu0 0.0
    %1638 = vmatpush1.msra.mxu0 0.0
    %1639 = vmatprep.subr.mxu0 0.0
    %1640 = vmatpush1.msra.mxu0 0.0
    %1641 = vmatprep.subr.mxu0 0.0
    %1642 = vmatpush1.msra.mxu0 0.0
    %1643 = vmatprep.subr.mxu0 0.0
    %1644 = vmatpush1.msra.mxu0 0.0
    %1645 = vmatprep.subr.mxu0 0.0
    %1646 = vmatpush1.msra.mxu0 0.0
    %1647 = vmatprep.subr.mxu0 0.0
    %1648 = vmatpush1.msra.mxu0 0.0
    %1649 = vmatprep.subr.mxu0 0.0
    %1650 = vmatpush1.msra.mxu0 0.0
    %1651 = vmatprep.subr.mxu0 0.0
    %1652 = vmatpush1.msra.mxu0 0.0
    %1653 = vmatprep.subr.mxu0 0.0
    %1654 = vmatpush1.msra.mxu0 0.0
    %1655 = vmatprep.subr.mxu0 0.0
    %1656 = vmatpush1.msra.mxu0 0.0
    %1657 = vmatprep.subr.mxu0 0.0
    %1658 = vmatpush1.msra.mxu0 0.0
    %1659 = vmatprep.subr.mxu0 0.0
    %1660 = vmatpush1.msra.mxu0 0.0
    %1661 = vmatprep.subr.mxu0 0.0
    %1662 = vmatpush1.msra.mxu0 0.0
    %1663 = vmatprep.subr.mxu0 0.0
    %1664 = vmatpush1.msra.mxu0 0.0
    %1665 = vmatprep.subr.mxu0 0.0
    %1666 = vmatpush1.msra.mxu0 0.0
    %1667 = vmatprep.subr.mxu0 0.0
    %1668 = vmatpush1.msra.mxu0 0.0
    %1669 = vmatprep.subr.mxu0 0.0
    %1670 = vmatpush1.msra.mxu0 0.0
    %1671 = vmatprep.subr.mxu0 0.0
    %1672 = vmatpush1.msra.mxu0 0.0
    %1673 = vmatprep.subr.mxu0 0.0
    %1674 = vmatpush1.msra.mxu0 0.0
    %1675 = vmatprep.subr.mxu0 0.0
    %1676 = vmatpush1.msra.mxu0 0.0
    %1677 = vmatprep.subr.mxu0 0.0
    %1678 = vmatpush1.msra.mxu0 0.0
    %1679 = vmatprep.subr.mxu0 0.0
    %1680 = vmatpush1.msra.mxu0 0.0
    %1681 = vmatprep.mubr.f32.mxu0 0.0
    %1682 = vmatmul.mubr.f32.gmra.mrb[0].mxu0 %v1609
    %v1683 = vpop.f32.mrb[0].mxu0
    %v1684 = vadd.f32 %v1595, %v1683
    %v1685 = vpop.f32.mrb[0].mxu0
    %1686 = vmatprep.mubr.f32.mxu0 0.0
    %1687 = vmatmul.mubr.f32.gmra.mrb[0].mxu0 %v1612
    %v1688 = vpop.f32.mrb[0].mxu0
    %v1689 = vadd.f32 %v1600, %v1688
    %v1690 = vpop.f32.mrb[0].mxu0
    %1691 = vmatprep.mubr.f32.mxu0 0.0
    %1692 = vmatmul.mubr.f32.gmra.mrb[0].mxu0 %v1615
    %v1693 = vpop.f32.mrb[0].mxu0
    %v1694 = vadd.f32 %v1605, %v1693
    %v1695 = vpop.f32.mrb[0].mxu0
    %1696 = vdwg.mxu0
    %v1697 = vld [vmem:[%s18] sm:$0x1]
    %v1699 = vlaneseq
    %v1700 = vshrl.u32 %v1699, 7
    %v1701 = vsub.s32 0, %v1700
    %v1702 = vrot.slane %v1697, %v1701
    %v1704 = vadd.f32 %v1684, %v1702
    %v1705 = vadd.f32 %v1689, %v1702
    %v1706 = vadd.f32 %v1694, %v1702
    %v1707 = vld [vmem:[%s17] sm:$0xff]
    %1708 = vmatprep.subr.mxu0 0.0
    %1709 = vmatpush1.msra.mxu0 %v1707
    %1710 = vmatprep.subr.mxu0 0.0
    %1711 = vmatpush1.msra.mxu0 0.0
    %1712 = vmatprep.subr.mxu0 0.0
    %1713 = vmatpush1.msra.mxu0 0.0
    %1714 = vmatprep.subr.mxu0 0.0
    %1715 = vmatpush1.msra.mxu0 0.0
    %1716 = vmatprep.subr.mxu0 0.0
    %1717 = vmatpush1.msra.mxu0 0.0
    %1718 = vmatprep.subr.mxu0 0.0
    %1719 = vmatpush1.msra.mxu0 0.0
    %1720 = vmatprep.subr.mxu0 0.0
    %1721 = vmatpush1.msra.mxu0 0.0
    %1722 = vmatprep.subr.mxu0 0.0
    %1723 = vmatpush1.msra.mxu0 0.0
    %1724 = vmatprep.subr.mxu0 0.0
    %1725 = vmatpush1.msra.mxu0 0.0
    %1726 = vmatprep.subr.mxu0 0.0
    %1727 = vmatpush1.msra.mxu0 0.0
    %1728 = vmatprep.subr.mxu0 0.0
    %1729 = vmatpush1.msra.mxu0 0.0
    %1730 = vmatprep.subr.mxu0 0.0
    %1731 = vmatpush1.msra.mxu0 0.0
    %1732 = vmatprep.subr.mxu0 0.0
    %1733 = vmatpush1.msra.mxu0 0.0
    %1734 = vmatprep.subr.mxu0 0.0
    %1735 = vmatpush1.msra.mxu0 0.0
    %1736 = vmatprep.subr.mxu0 0.0
    %1737 = vmatpush1.msra.mxu0 0.0
    %1738 = vmatprep.subr.mxu0 0.0
    %1739 = vmatpush1.msra.mxu0 0.0
    %1740 = vmatprep.subr.mxu0 0.0
    %1741 = vmatpush1.msra.mxu0 0.0
    %1742 = vmatprep.subr.mxu0 0.0
    %1743 = vmatpush1.msra.mxu0 0.0
    %1744 = vmatprep.subr.mxu0 0.0
    %1745 = vmatpush1.msra.mxu0 0.0
    %1746 = vmatprep.subr.mxu0 0.0
    %1747 = vmatpush1.msra.mxu0 0.0
    %1748 = vmatprep.subr.mxu0 0.0
    %1749 = vmatpush1.msra.mxu0 0.0
    %1750 = vmatprep.subr.mxu0 0.0
    %1751 = vmatpush1.msra.mxu0 0.0
    %1752 = vmatprep.subr.mxu0 0.0
    %1753 = vmatpush1.msra.mxu0 0.0
    %1754 = vmatprep.subr.mxu0 0.0
    %1755 = vmatpush1.msra.mxu0 0.0
    %1756 = vmatprep.subr.mxu0 0.0
    %1757 = vmatpush1.msra.mxu0 0.0
    %1758 = vmatprep.subr.mxu0 0.0
    %1759 = vmatpush1.msra.mxu0 0.0
    %1760 = vmatprep.subr.mxu0 0.0
    %1761 = vmatpush1.msra.mxu0 0.0
    %1762 = vmatprep.subr.mxu0 0.0
    %1763 = vmatpush1.msra.mxu0 0.0
    %1764 = vmatprep.subr.mxu0 0.0
    %1765 = vmatpush1.msra.mxu0 0.0
    %1766 = vmatprep.subr.mxu0 0.0
    %1767 = vmatpush1.msra.mxu0 0.0
    %1768 = vmatprep.subr.mxu0 0.0
    %1769 = vmatpush1.msra.mxu0 0.0
    %1770 = vmatprep.subr.mxu0 0.0
    %1771 = vmatpush1.msra.mxu0 0.0
    %1772 = vmatprep.mubr.f32.mxu0 0.0
    %1773 = vmatmul.mubr.f32.gmra.mrb[0].mxu0 %v889
    %v1774 = vpop.f32.mrb[0].mxu0
    %v1775 = vadd.f32 0.0, %v1774
    %v1776 = vpop.f32.mrb[0].mxu0
    %1777 = vdwg.mxu0
    %v1778 = vadd.f32 %v1704, %v1775
    %v1779 = vxor.u32 %v1778, 2147483648
    %v1780 = vmul.f32 %v1779, 1.442695
    %v1781 = vpow.pop %v1780
    %v1782 = vadd.f32 %v1781, 1.0
    %v1783 = vrcp.pop %v1782
    %v1784 = vmul.f32 1.0, %v1783
    %v1785 = vtanh.pop %v1778
    %v1786 = vmul.f32 %v1784, 0.0
    %1788 = vrot.lane.b32.xlu0 %v1785, 112
    %v1789 = vpop.permute.xlu0 %1788
    %v1791 = vmul.f32 %v1784, %v1789
    %1793 = vrot.lane.b32.xlu0 %v1791, 8
    %v1794 = vpop.permute.xlu0 %1793
    %v1796 = vadd.f32 %v1786, %v1794
    %v1797 = vtanh.pop %v1796
    %1799 = vrot.lane.b32.xlu0 %v1797, 16
    %v1800 = vpop.permute.xlu0 %1799
    %v1802 = vmul.f32 %v1784, %v1800
    %1804 = vrot.lane.b32.xlu0 %v1802, 104
    %v1805 = vpop.permute.xlu0 %1804
    %v1806 = vsel %vm380, %v1805, 0
    %1808 = vmatprep.subr.mxu0 0.0
    %1809 = vmatpush1.msra.mxu0 %v1707
    %1810 = vmatprep.subr.mxu0 0.0
    %1811 = vmatpush1.msra.mxu0 0.0
    %1812 = vmatprep.subr.mxu0 0.0
    %1813 = vmatpush1.msra.mxu0 0.0
    %1814 = vmatprep.subr.mxu0 0.0
    %1815 = vmatpush1.msra.mxu0 0.0
    %1816 = vmatprep.subr.mxu0 0.0
    %1817 = vmatpush1.msra.mxu0 0.0
    %1818 = vmatprep.subr.mxu0 0.0
    %1819 = vmatpush1.msra.mxu0 0.0
    %1820 = vmatprep.subr.mxu0 0.0
    %1821 = vmatpush1.msra.mxu0 0.0
    %1822 = vmatprep.subr.mxu0 0.0
    %1823 = vmatpush1.msra.mxu0 0.0
    %1824 = vmatprep.subr.mxu0 0.0
    %1825 = vmatpush1.msra.mxu0 0.0
    %1826 = vmatprep.subr.mxu0 0.0
    %1827 = vmatpush1.msra.mxu0 0.0
    %1828 = vmatprep.subr.mxu0 0.0
    %1829 = vmatpush1.msra.mxu0 0.0
    %1830 = vmatprep.subr.mxu0 0.0
    %1831 = vmatpush1.msra.mxu0 0.0
    %1832 = vmatprep.subr.mxu0 0.0
    %1833 = vmatpush1.msra.mxu0 0.0
    %1834 = vmatprep.subr.mxu0 0.0
    %1835 = vmatpush1.msra.mxu0 0.0
    %1836 = vmatprep.subr.mxu0 0.0
    %1837 = vmatpush1.msra.mxu0 0.0
    %1838 = vmatprep.subr.mxu0 0.0
    %1839 = vmatpush1.msra.mxu0 0.0
    %1840 = vmatprep.subr.mxu0 0.0
    %1841 = vmatpush1.msra.mxu0 0.0
    %1842 = vmatprep.subr.mxu0 0.0
    %1843 = vmatpush1.msra.mxu0 0.0
    %1844 = vmatprep.subr.mxu0 0.0
    %1845 = vmatpush1.msra.mxu0 0.0
    %1846 = vmatprep.subr.mxu0 0.0
    %1847 = vmatpush1.msra.mxu0 0.0
    %1848 = vmatprep.subr.mxu0 0.0
    %1849 = vmatpush1.msra.mxu0 0.0
    %1850 = vmatprep.subr.mxu0 0.0
    %1851 = vmatpush1.msra.mxu0 0.0
    %1852 = vmatprep.subr.mxu0 0.0
    %1853 = vmatpush1.msra.mxu0 0.0
    %1854 = vmatprep.subr.mxu0 0.0
    %1855 = vmatpush1.msra.mxu0 0.0
    %1856 = vmatprep.subr.mxu0 0.0
    %1857 = vmatpush1.msra.mxu0 0.0
    %1858 = vmatprep.subr.mxu0 0.0
    %1859 = vmatpush1.msra.mxu0 0.0
    %1860 = vmatprep.subr.mxu0 0.0
    %1861 = vmatpush1.msra.mxu0 0.0
    %1862 = vmatprep.subr.mxu0 0.0
    %1863 = vmatpush1.msra.mxu0 0.0
    %1864 = vmatprep.subr.mxu0 0.0
    %1865 = vmatpush1.msra.mxu0 0.0
    %1866 = vmatprep.subr.mxu0 0.0
    %1867 = vmatpush1.msra.mxu0 0.0
    %1868 = vmatprep.subr.mxu0 0.0
    %1869 = vmatpush1.msra.mxu0 0.0
    %1870 = vmatprep.subr.mxu0 0.0
    %1871 = vmatpush1.msra.mxu0 0.0
    %1872 = vmatprep.mubr.f32.mxu0 0.0
    %1873 = vmatmul.mubr.f32.gmra.mrb[0].mxu0 %v1806
    %v1874 = vpop.f32.mrb[0].mxu0
    %v1875 = vadd.f32 0.0, %v1874
    %v1876 = vpop.f32.mrb[0].mxu0
    %1877 = vdwg.mxu0
    %v1878 = vadd.f32 %v1705, %v1875
    %v1879 = vxor.u32 %v1878, 2147483648
    %v1880 = vmul.f32 %v1879, 1.442695
    %v1881 = vpow.pop %v1880
    %v1882 = vadd.f32 %v1881, 1.0
    %v1883 = vrcp.pop %v1882
    %v1884 = vmul.f32 1.0, %v1883
    %v1885 = vtanh.pop %v1878
    %v1886 = vmul.f32 %v1884, %v1796
    %1888 = vrot.lane.b32.xlu0 %v1885, 112
    %v1889 = vpop.permute.xlu0 %1888
    %v1891 = vmul.f32 %v1884, %v1889
    %1893 = vrot.lane.b32.xlu0 %v1891, 8
    %v1894 = vpop.permute.xlu0 %1893
    %v1896 = vadd.f32 %v1886, %v1894
    %v1897 = vtanh.pop %v1896
    %1899 = vrot.lane.b32.xlu0 %v1897, 16
    %v1900 = vpop.permute.xlu0 %1899
    %v1902 = vmul.f32 %v1884, %v1900
    %1904 = vrot.lane.b32.xlu0 %v1902, 104
    %v1905 = vpop.permute.xlu0 %1904
    %v1906 = vsel %vm380, %v1905, 0
    %1908 = vmatprep.subr.mxu0 0.0
    %1909 = vmatpush1.msra.mxu0 %v1707
    %1910 = vmatprep.subr.mxu0 0.0
    %1911 = vmatpush1.msra.mxu0 0.0
    %1912 = vmatprep.subr.mxu0 0.0
    %1913 = vmatpush1.msra.mxu0 0.0
    %1914 = vmatprep.subr.mxu0 0.0
    %1915 = vmatpush1.msra.mxu0 0.0
    %1916 = vmatprep.subr.mxu0 0.0
    %1917 = vmatpush1.msra.mxu0 0.0
    %1918 = vmatprep.subr.mxu0 0.0
    %1919 = vmatpush1.msra.mxu0 0.0
    %1920 = vmatprep.subr.mxu0 0.0
    %1921 = vmatpush1.msra.mxu0 0.0
    %1922 = vmatprep.subr.mxu0 0.0
    %1923 = vmatpush1.msra.mxu0 0.0
    %1924 = vmatprep.subr.mxu0 0.0
    %1925 = vmatpush1.msra.mxu0 0.0
    %1926 = vmatprep.subr.mxu0 0.0
    %1927 = vmatpush1.msra.mxu0 0.0
    %1928 = vmatprep.subr.mxu0 0.0
    %1929 = vmatpush1.msra.mxu0 0.0
    %1930 = vmatprep.subr.mxu0 0.0
    %1931 = vmatpush1.msra.mxu0 0.0
    %1932 = vmatprep.subr.mxu0 0.0
    %1933 = vmatpush1.msra.mxu0 0.0
    %1934 = vmatprep.subr.mxu0 0.0
    %1935 = vmatpush1.msra.mxu0 0.0
    %1936 = vmatprep.subr.mxu0 0.0
    %1937 = vmatpush1.msra.mxu0 0.0
    %1938 = vmatprep.subr.mxu0 0.0
    %1939 = vmatpush1.msra.mxu0 0.0
    %1940 = vmatprep.subr.mxu0 0.0
    %1941 = vmatpush1.msra.mxu0 0.0
    %1942 = vmatprep.subr.mxu0 0.0
    %1943 = vmatpush1.msra.mxu0 0.0
    %1944 = vmatprep.subr.mxu0 0.0
    %1945 = vmatpush1.msra.mxu0 0.0
    %1946 = vmatprep.subr.mxu0 0.0
    %1947 = vmatpush1.msra.mxu0 0.0
    %1948 = vmatprep.subr.mxu0 0.0
    %1949 = vmatpush1.msra.mxu0 0.0
    %1950 = vmatprep.subr.mxu0 0.0
    %1951 = vmatpush1.msra.mxu0 0.0
    %1952 = vmatprep.subr.mxu0 0.0
    %1953 = vmatpush1.msra.mxu0 0.0
    %1954 = vmatprep.subr.mxu0 0.0
    %1955 = vmatpush1.msra.mxu0 0.0
    %1956 = vmatprep.subr.mxu0 0.0
    %1957 = vmatpush1.msra.mxu0 0.0
    %1958 = vmatprep.subr.mxu0 0.0
    %1959 = vmatpush1.msra.mxu0 0.0
    %1960 = vmatprep.subr.mxu0 0.0
    %1961 = vmatpush1.msra.mxu0 0.0
    %1962 = vmatprep.subr.mxu0 0.0
    %1963 = vmatpush1.msra.mxu0 0.0
    %1964 = vmatprep.subr.mxu0 0.0
    %1965 = vmatpush1.msra.mxu0 0.0
    %1966 = vmatprep.subr.mxu0 0.0
    %1967 = vmatpush1.msra.mxu0 0.0
    %1968 = vmatprep.subr.mxu0 0.0
    %1969 = vmatpush1.msra.mxu0 0.0
    %1970 = vmatprep.subr.mxu0 0.0
    %1971 = vmatpush1.msra.mxu0 0.0
    %1972 = vmatprep.mubr.f32.mxu0 0.0
    %1973 = vmatmul.mubr.f32.gmra.mrb[0].mxu0 %v1906
    %v1974 = vpop.f32.mrb[0].mxu0
    %v1975 = vadd.f32 0.0, %v1974
    %v1976 = vpop.f32.mrb[0].mxu0
    %1977 = vdwg.mxu0
    %v1978 = vadd.f32 %v1706, %v1975
    %v1979 = vxor.u32 %v1978, 2147483648
    %v1980 = vmul.f32 %v1979, 1.442695
    %v1981 = vpow.pop %v1980
    %v1982 = vadd.f32 %v1981, 1.0
    %v1983 = vrcp.pop %v1982
    %v1984 = vmul.f32 1.0, %v1983
    %v1985 = vtanh.pop %v1978
    %v1986 = vmul.f32 %v1984, %v1896
    %1988 = vrot.lane.b32.xlu0 %v1985, 112
    %v1989 = vpop.permute.xlu0 %1988
    %v1991 = vmul.f32 %v1984, %v1989
    %1993 = vrot.lane.b32.xlu0 %v1991, 8
    %v1994 = vpop.permute.xlu0 %1993
    %v1996 = vadd.f32 %v1986, %v1994
    %v1997 = vtanh.pop %v1996
    %1999 = vrot.lane.b32.xlu0 %v1997, 16
    %v2000 = vpop.permute.xlu0 %1999
    %v2002 = vmul.f32 %v1984, %v2000
    %v2003 = vxor.u32 %v1706, 2147483648
    %v2004 = vmul.f32 %v2003, 1.442695
    %v2005 = vpow.pop %v2004
    %v2006 = vadd.f32 %v2005, 1.0
    %v2007 = vrcp.pop %v2006
    %v2008 = vmul.f32 1.0, %v2007
    %v2009 = vtanh.pop %v1706
    %v2010 = vmul.f32 %v2008, 0.0
    %2012 = vrot.lane.b32.xlu0 %v2009, 112
    %v2013 = vpop.permute.xlu0 %2012
    %v2015 = vmul.f32 %v2008, %v2013
    %2017 = vrot.lane.b32.xlu0 %v2015, 8
    %v2018 = vpop.permute.xlu0 %2017
    %v2020 = vadd.f32 %v2010, %v2018
    %v2021 = vtanh.pop %v2020
    %2023 = vrot.lane.b32.xlu0 %v2021, 16
    %v2024 = vpop.permute.xlu0 %2023
    %v2026 = vmul.f32 %v2008, %v2024
    %v2027 = vld [vmem:[%s19] sm:$0xff]
    %v2028 = vld [vmem:[%s19 + $0x8] sm:$0xff]
    %2030 = vrot.lane.b32.xlu0 %v2026, 72
    %v2031 = vpop.permute.xlu0 %2030
    %v2032 = vsel %vm380, %v2031, 0
    %2034 = vmatprep.subr.mxu0 0.0
    %2035 = vmatpush1.msra.mxu0 %v2028
    %2036 = vmatprep.subr.mxu0 0.0
    %2037 = vmatpush1.msra.mxu0 0.0
    %2038 = vmatprep.subr.mxu0 0.0
    %2039 = vmatpush1.msra.mxu0 0.0
    %2040 = vmatprep.subr.mxu0 0.0
    %2041 = vmatpush1.msra.mxu0 0.0
    %2042 = vmatprep.subr.mxu0 0.0
    %2043 = vmatpush1.msra.mxu0 0.0
    %2044 = vmatprep.subr.mxu0 0.0
    %2045 = vmatpush1.msra.mxu0 0.0
    %2046 = vmatprep.subr.mxu0 0.0
    %2047 = vmatpush1.msra.mxu0 0.0
    %2048 = vmatprep.subr.mxu0 0.0
    %2049 = vmatpush1.msra.mxu0 0.0
    %2050 = vmatprep.subr.mxu0 0.0
    %2051 = vmatpush1.msra.mxu0 0.0
    %2052 = vmatprep.subr.mxu0 0.0
    %2053 = vmatpush1.msra.mxu0 0.0
    %2054 = vmatprep.subr.mxu0 0.0
    %2055 = vmatpush1.msra.mxu0 0.0
    %2056 = vmatprep.subr.mxu0 0.0
    %2057 = vmatpush1.msra.mxu0 0.0
    %2058 = vmatprep.subr.mxu0 0.0
    %2059 = vmatpush1.msra.mxu0 0.0
    %2060 = vmatprep.subr.mxu0 0.0
    %2061 = vmatpush1.msra.mxu0 0.0
    %2062 = vmatprep.subr.mxu0 0.0
    %2063 = vmatpush1.msra.mxu0 0.0
    %2064 = vmatprep.subr.mxu0 0.0
    %2065 = vmatpush1.msra.mxu0 0.0
    %2066 = vmatprep.subr.mxu0 0.0
    %2067 = vmatpush1.msra.mxu0 0.0
    %2068 = vmatprep.subr.mxu0 0.0
    %2069 = vmatpush1.msra.mxu0 0.0
    %2070 = vmatprep.subr.mxu0 0.0
    %2071 = vmatpush1.msra.mxu0 0.0
    %2072 = vmatprep.subr.mxu0 0.0
    %2073 = vmatpush1.msra.mxu0 0.0
    %2074 = vmatprep.subr.mxu0 0.0
    %2075 = vmatpush1.msra.mxu0 0.0
    %2076 = vmatprep.subr.mxu0 0.0
    %2077 = vmatpush1.msra.mxu0 0.0
    %2078 = vmatprep.subr.mxu0 0.0
    %2079 = vmatpush1.msra.mxu0 0.0
    %2080 = vmatprep.subr.mxu0 0.0
    %2081 = vmatpush1.msra.mxu0 0.0
    %2082 = vmatprep.subr.mxu0 0.0
    %2083 = vmatpush1.msra.mxu0 0.0
    %2084 = vmatprep.subr.mxu0 0.0
    %2085 = vmatpush1.msra.mxu0 0.0
    %2086 = vmatprep.subr.mxu0 0.0
    %2087 = vmatpush1.msra.mxu0 0.0
    %2088 = vmatprep.subr.mxu0 0.0
    %2089 = vmatpush1.msra.mxu0 0.0
    %2090 = vmatprep.subr.mxu0 0.0
    %2091 = vmatpush1.msra.mxu0 0.0
    %2092 = vmatprep.subr.mxu0 0.0
    %2093 = vmatpush1.msra.mxu0 0.0
    %2094 = vmatprep.subr.mxu0 0.0
    %2095 = vmatpush1.msra.mxu0 0.0
    %2096 = vmatprep.subr.mxu0 0.0
    %2097 = vmatpush1.msra.mxu0 0.0
    %2098 = vmatprep.mubr.f32.mxu0 0.0
    %2099 = vmatmul.mubr.f32.gmra.mrb[0].mxu0 %v2032
    %v2100 = vpop.f32.mrb[0].mxu0
    %v2101 = vadd.f32 0.0, %v2100
    %v2102 = vpop.f32.mrb[0].mxu0
    %2103 = vdwg.mxu0
    %2105 = vrot.lane.b32.xlu0 %v2002, 104
    %v2106 = vpop.permute.xlu0 %2105
    %v2107 = vsel %vm380, %v2106, 0
    %2109 = vmatprep.subr.mxu0 0.0
    %2110 = vmatpush1.msra.mxu0 %v2027
    %2111 = vmatprep.subr.mxu0 0.0
    %2112 = vmatpush1.msra.mxu0 0.0
    %2113 = vmatprep.subr.mxu0 0.0
    %2114 = vmatpush1.msra.mxu0 0.0
    %2115 = vmatprep.subr.mxu0 0.0
    %2116 = vmatpush1.msra.mxu0 0.0
    %2117 = vmatprep.subr.mxu0 0.0
    %2118 = vmatpush1.msra.mxu0 0.0
    %2119 = vmatprep.subr.mxu0 0.0
    %2120 = vmatpush1.msra.mxu0 0.0
    %2121 = vmatprep.subr.mxu0 0.0
    %2122 = vmatpush1.msra.mxu0 0.0
    %2123 = vmatprep.subr.mxu0 0.0
    %2124 = vmatpush1.msra.mxu0 0.0
    %2125 = vmatprep.subr.mxu0 0.0
    %2126 = vmatpush1.msra.mxu0 0.0
    %2127 = vmatprep.subr.mxu0 0.0
    %2128 = vmatpush1.msra.mxu0 0.0
    %2129 = vmatprep.subr.mxu0 0.0
    %2130 = vmatpush1.msra.mxu0 0.0
    %2131 = vmatprep.subr.mxu0 0.0
    %2132 = vmatpush1.msra.mxu0 0.0
    %2133 = vmatprep.subr.mxu0 0.0
    %2134 = vmatpush1.msra.mxu0 0.0
    %2135 = vmatprep.subr.mxu0 0.0
    %2136 = vmatpush1.msra.mxu0 0.0
    %2137 = vmatprep.subr.mxu0 0.0
    %2138 = vmatpush1.msra.mxu0 0.0
    %2139 = vmatprep.subr.mxu0 0.0
    %2140 = vmatpush1.msra.mxu0 0.0
    %2141 = vmatprep.subr.mxu0 0.0
    %2142 = vmatpush1.msra.mxu0 0.0
    %2143 = vmatprep.subr.mxu0 0.0
    %2144 = vmatpush1.msra.mxu0 0.0
    %2145 = vmatprep.subr.mxu0 0.0
    %2146 = vmatpush1.msra.mxu0 0.0
    %2147 = vmatprep.subr.mxu0 0.0
    %2148 = vmatpush1.msra.mxu0 0.0
    %2149 = vmatprep.subr.mxu0 0.0
    %2150 = vmatpush1.msra.mxu0 0.0
    %2151 = vmatprep.subr.mxu0 0.0
    %2152 = vmatpush1.msra.mxu0 0.0
    %2153 = vmatprep.subr.mxu0 0.0
    %2154 = vmatpush1.msra.mxu0 0.0
    %2155 = vmatprep.subr.mxu0 0.0
    %2156 = vmatpush1.msra.mxu0 0.0
    %2157 = vmatprep.subr.mxu0 0.0
    %2158 = vmatpush1.msra.mxu0 0.0
    %2159 = vmatprep.subr.mxu0 0.0
    %2160 = vmatpush1.msra.mxu0 0.0
    %2161 = vmatprep.subr.mxu0 0.0
    %2162 = vmatpush1.msra.mxu0 0.0
    %2163 = vmatprep.subr.mxu0 0.0
    %2164 = vmatpush1.msra.mxu0 0.0
    %2165 = vmatprep.subr.mxu0 0.0
    %2166 = vmatpush1.msra.mxu0 0.0
    %2167 = vmatprep.subr.mxu0 0.0
    %2168 = vmatpush1.msra.mxu0 0.0
    %2169 = vmatprep.subr.mxu0 0.0
    %2170 = vmatpush1.msra.mxu0 0.0
    %2171 = vmatprep.subr.mxu0 0.0
    %2172 = vmatpush1.msra.mxu0 0.0
    %2173 = vmatprep.mubr.f32.mxu0 0.0
    %2174 = vmatmul.mubr.f32.gmra.mrb[0].mxu0 %v2107
    %v2175 = vpop.f32.mrb[0].mxu0
    %v2176 = vadd.f32 %v2101, %v2175
    %v2177 = vpop.f32.mrb[0].mxu0
    %2178 = vdwg.mxu0
    %v2179 = vld [vmem:[%s20] sm:$0x1]
    %v2181 = vlaneseq
    %v2182 = vshrl.u32 %v2181, 7
    %v2183 = vsub.s32 0, %v2182
    %v2184 = vrot.slane %v2179, %v2183
    %v2186 = vadd.f32 %v2176, %v2184
    %v2187 = vsel %vm380, %v2186, -inf
    %2188 = vmax.xlane.f32.xlu0 %v2187
    %v2189 = vpop.xlane.xlu0 %2188
    %v2190 = vsub.f32 %v2186, %v2189
    %v2191 = vmul.f32 %v2190, 1.442695
    %v2192 = vpow.pop %v2191
    %v2193 = vsel %vm380, %v2192, 0.0
    %2194 = vadd.xlane.f32.xlu0 %v2193
    %v2195 = vpop.xlane.xlu0 %2194
    %v2196 = vlog2.pop %v2195
    %v2197 = vmul.f32 %v2196, 0.6931472
    %v2198 = vsub.f32 %v2190, %v2197
    %2199 = vst.msk [vmem:[#allocation4] sm:$0xff] %vm380, %v2198
    // Predicated region
    $region86: #{mygnn_forward.1} parent=1 // pred_check
      _
    $region87: #{mygnn_forward.1} parent=1 // pred_check_branch
      %2201 = sbr.rel (0) target = $region89
    $region88: #{mygnn_forward.1} parent=1 // pred_region
      %s2203 = ssub.s32 128, 128
      %2204 = vsyncadd [#allocation5], %s2203
      %s2206 = sshll.u32 [#allocation4], 4
      %s2207 = int_to_ptr.vmem [resolvable:$true] %s2206
      %2209 = dma.vmem_to_hbm [thread:$0]  %s2207, 128, %s21, [#allocation5]
    $region89: #{mygnn_forward.1} parent=1 // pred_fallthru
      _
    // Predicated region
    $region90: #{mygnn_forward.1} parent=1 // pred_check
      _
    $region91: #{mygnn_forward.1} parent=1 // pred_check_branch
      %2211 = sbr.rel (0) target = $region93
    $region92: #{mygnn_forward.1} parent=1 // pred_region
      %2212 = dma.done [#allocation5], 128
    $region93: #{mygnn_forward.1} parent=1 // pred_fallthru
      _
    %2213 = vsyncpa [#allocation5], 1

</llo_original>
